<compile_context>
chip_gen: v7x
topology: tpu7x:2x2x1
jax: 0.10.0
libtpu: 0.0.40
codegen_flags: <defaults>
</compile_context>

<pallas_src>
import functools

import jax
import jax.numpy as jnp
import numpy as np
from jax import lax
from jax.experimental import pallas as pl
from jax.experimental.pallas import tpu as pltpu


# ----------------------------- kernel 1: qkv projection -----------------------------

def _qkv_proj_kernel(x_ref, w_ref, o_ref):
    # x block: (1, TP, C) bf16 ; w: (C, 3C) bf16 (scale already folded into Q columns).
    o_ref[0] = jnp.dot(x_ref[0], w_ref[...],
                       preferred_element_type=jnp.float32).astype(o_ref.dtype)


# --------------------- kernel 2: flash attention + fused out-proj -------------------

def _flash_attn_proj_kernel(q_ref, k_ref, v_ref, wp_ref, bp_ref, o_ref,
                            acc_o, acc_pv, l_acc, *, cap):
    h = pl.program_id(2)
    kv = pl.program_id(3)
    num_h = pl.num_programs(2)
    num_kv = pl.num_programs(3)

    # new (batch, q-tile): zero the projected-output accumulator
    @pl.when(jnp.logical_and(h == 0, kv == 0))
    def _():
        acc_o[...] = jnp.zeros_like(acc_o)

    # new head: zero the per-head online-softmax state
    @pl.when(kv == 0)
    def _():
        acc_pv[...] = jnp.zeros_like(acc_pv)
        l_acc[...] = jnp.zeros_like(l_acc)

    q = q_ref[0, 0]            # (TQ, D) bf16, q-scale pre-folded into Wq
    k = k_ref[0, 0]            # (TKV, D) bf16
    v = v_ref[0, 0]            # (TKV, D) bf16

    # scores: contract last dims of q and k directly (no k.T relayout), f32 acc on MXU
    s = lax.dot_general(q, k, (((1,), (1,)), ((), ())),
                        preferred_element_type=jnp.float32)        # (TQ, TKV) f32

    # logit soft-capping -> logits bounded in [-cap, cap]; a constant shift replaces
    # the per-row max subtraction (no XLU cross-lane reduce needed before exp).
    # TODO(synk): on v6e/v7x the tanh/exp could run in bf16 for 2x EUP throughput.
    s = cap * jnp.tanh(s * (1.0 / cap))
    p = jnp.exp(s - cap)                                           # in (0, 1]

    l_acc[...] += jnp.sum(p, axis=-1, keepdims=True)
    acc_pv[...] += jnp.dot(p.astype(v.dtype), v,
                           preferred_element_type=jnp.float32)     # (TQ, D) f32

    # end of this head's kv sweep: normalize and fold the output projection per head
    @pl.when(kv == num_kv - 1)
    def _():
        inv_l = pl.reciprocal(l_acc[...], approx=True)             # EUP, nearly free
        head_out = (acc_pv[...] * inv_l).astype(wp_ref.dtype)      # (TQ, D) bf16
        acc_o[...] += jnp.dot(head_out, wp_ref[0],
                              preferred_element_type=jnp.float32)  # (TQ, C) f32

    # last head, last kv tile: add bias and write the lane-dense (TQ, C) output slab
    @pl.when(jnp.logical_and(h == num_h - 1, kv == num_kv - 1))
    def _():
        o_ref[0] = (acc_o[...] + bp_ref[...]).astype(o_ref.dtype)


# ----------------------------------- wrapper ----------------------------------------

def _pick_tile(n, preferred):
    for t in (preferred, 128, 64, 32, 16, 8):
        if n % t == 0:
            return t
    return n  # fall back to the full dimension (allowed by BlockSpec rules)


def stable_attention(x, w_qkv, w_proj, b_proj, *, num_heads, max_attn_val=30.0):
    """x: (B, N, C); w_qkv: (3C, C) torch layout; w_proj: (C, C) torch layout; b_proj: (C,)."""
    B, N, C = x.shape
    assert C % num_heads == 0
    D = C // num_heads
    scale = D ** (-0.5)
    out_dtype = x.dtype

    # -------- parameter prep (one-time glue) --------
    wqkv_t = jnp.asarray(w_qkv, jnp.float32).T                      # (C, 3C)
    col_scale = jnp.concatenate(
        [jnp.full((C,), scale, jnp.float32), jnp.ones((2 * C,), jnp.float32)])
    wqkv_bf = (wqkv_t * col_scale[None, :]).astype(jnp.bfloat16)    # scale folded into Wq
    wproj_h = jnp.asarray(w_proj, jnp.float32).T.reshape(num_heads, D, C) \
                 .astype(jnp.bfloat16)                              # (H, D, C)
    bproj = jnp.asarray(b_proj, jnp.float32).reshape(1, C)
    x_bf = x.astype(jnp.bfloat16)

    # -------- kernel 1: fused qkv projection --------
    TP = _pick_tile(N, 256)
    qkv = pl.pallas_call(
        _qkv_proj_kernel,
        out_shape=jax.ShapeDtypeStruct((B, N, 3 * C), jnp.bfloat16),
        grid_spec=pltpu.PrefetchScalarGridSpec(
            num_scalar_prefetch=0,
            grid=(B, N // TP),
            in_specs=[
                pl.BlockSpec((1, TP, C), lambda b, i: (b, i, 0)),
                pl.BlockSpec((C, 3 * C), lambda b, i: (0, 0)),
            ],
            out_specs=pl.BlockSpec((1, TP, 3 * C), lambda b, i: (b, i, 0)),
        ),
        compiler_params=pltpu.CompilerParams(
            dimension_semantics=("parallel", "parallel"),
            vmem_limit_bytes=48 * 1024 * 1024),
    )(x_bf, wqkv_bf)

    # layout plumbing (wrapper-side, not compute): split heads -> (B, H, N, D)
    qkv = qkv.reshape(B, N, 3, num_heads, D)
    q = jnp.transpose(qkv[:, :, 0], (0, 2, 1, 3))
    k = jnp.transpose(qkv[:, :, 1], (0, 2, 1, 3))
    v = jnp.transpose(qkv[:, :, 2], (0, 2, 1, 3))

    # -------- kernel 2: flash attention with fused per-head output projection --------
    TQ = _pick_tile(N, 128)    # 256 is better on v6e/v7x for big N; 128 fits v5e nicely
    TKV = _pick_tile(N, 128)
    nq, nkv = N // TQ, N // TKV

    kernel = functools.partial(_flash_attn_proj_kernel, cap=float(max_attn_val))

    out = pl.pallas_call(
        kernel,
        out_shape=jax.ShapeDtypeStruct((B, N, C), out_dtype),
        grid_spec=pltpu.PrefetchScalarGridSpec(
            num_scalar_prefetch=0,
            grid=(B, nq, num_heads, nkv),
            in_specs=[
                pl.BlockSpec((1, 1, TQ, D), lambda b, qi, h, ki: (b, h, qi, 0)),   # q
                pl.BlockSpec((1, 1, TKV, D), lambda b, qi, h, ki: (b, h, ki, 0)),  # k
                pl.BlockSpec((1, 1, TKV, D), lambda b, qi, h, ki: (b, h, ki, 0)),  # v
                pl.BlockSpec((1, D, C), lambda b, qi, h, ki: (h, 0, 0)),           # Wproj per head
                pl.BlockSpec((1, C), lambda b, qi, h, ki: (0, 0)),                 # bias
            ],
            out_specs=pl.BlockSpec((1, TQ, C), lambda b, qi, h, ki: (b, qi, 0)),
            scratch_shapes=[
                pltpu.VMEM((TQ, C), jnp.float32),   # projected-output accumulator
                pltpu.VMEM((TQ, D), jnp.float32),   # per-head P@V accumulator
                pltpu.VMEM((TQ, 1), jnp.float32),   # per-head sum(exp) accumulator
            ],
        ),
        compiler_params=pltpu.CompilerParams(
            dimension_semantics=("parallel", "parallel", "arbitrary", "arbitrary"),
            vmem_limit_bytes=48 * 1024 * 1024),
    )(q, k, v, wproj_h, bproj)

    return out


# -------------------------------- f32 reference --------------------------------------

def _reference(x, w_qkv, w_proj, b_proj, *, num_heads, max_attn_val=30.0):
    B, N, C = x.shape
    head_dim = C // num_heads
    scale = head_dim ** (-0.5)
    qkv = jnp.einsum("bnc,oc->bno", x, w_qkv)                       # (B, N, 3C)
    qkv = qkv.reshape(B, N, 3, num_heads, head_dim).transpose(2, 0, 3, 1, 4)
    q, k, v = qkv[0], qkv[1], qkv[2]                                # (B, H, N, hd)
    q = q * scale
    attn = jnp.einsum("bhqd,bhkd->bhqk", q, k)
    attn = max_attn_val * jnp.tanh(attn / max_attn_val)
    attn = jax.nn.softmax(attn, axis=-1)
    out = jnp.einsum("bhqk,bhkd->bhqd", attn, v)
    out = out.transpose(0, 2, 1, 3).reshape(B, N, C)
    return jnp.einsum("bnc,oc->bno", out, w_proj) + b_proj


if __name__ == "__main__":
    # Small but TPU-tile-friendly shapes: B=2, N=256 tokens, C=256 dim, 2 heads
    # (exercises multiple q-tiles, kv-tiles and the head/projection accumulation).
    B, N, C = 2, 256, 256
    num_heads = 2

    key = jax.random.PRNGKey(0)
    kx, kw1, kw2, kb = jax.random.split(key, 4)
    x = jax.random.normal(kx, (B, N, C), dtype=jnp.float32)
    # Deterministic synthetic parameters (PyTorch Linear layout: (out, in)).
    w_qkv = jax.random.normal(kw1, (3 * C, C), dtype=jnp.float32) * 0.05
    w_proj = jax.random.normal(kw2, (C, C), dtype=jnp.float32) * 0.05
    b_proj = jax.random.normal(kb, (C,), dtype=jnp.float32) * 0.05

    out = jax.block_until_ready(
        stable_attention(x, w_qkv, w_proj, b_proj,
                         num_heads=num_heads, max_attn_val=30.0))
    ref = jax.block_until_ready(
        _reference(x, w_qkv, w_proj, b_proj, num_heads=num_heads, max_attn_val=30.0))

    # bf16 MXU inputs + approx reciprocal -> compare against the f32 reference with a
    # looser tolerance (per review guidance).
    np.testing.assert_allclose(np.asarray(out), np.asarray(ref), rtol=3e-2, atol=3e-2)

    print("KERNEL_OK")
</pallas_src>

<mosaic_0001>
module attributes {stable_mosaic.version = 11 : i64} {
  func.func @_qkv_proj_kernel(%arg0: i32, %arg1: i32, %arg2: memref<1x256x256xbf16, #tpu.memory_space<vmem>>, %arg3: memref<256x768xbf16, #tpu.memory_space<vmem>>, %arg4: memref<1x256x768xbf16, #tpu.memory_space<vmem>>) attributes {dimension_semantics = [#tpu.dimension_semantics<parallel>, #tpu.dimension_semantics<parallel>], iteration_bounds = array<i64: 2, 1>, scalar_prefetch = 0 : i64, scratch_operands = 0 : i64, tpu.core_type = #tpu.core_type<tc>, window_params = [{transform_indices = @transform_0, window_bounds = array<i64: 1, 256, 256>}, {pipeline_mode = #tpu.pipeline_mode<synchronous>, transform_indices = @transform_1, window_bounds = array<i64: 256, 768>}, {transform_indices = @transform_2, window_bounds = array<i64: 1, 256, 768>}]} {
    %c0 = arith.constant 0 : index
    %c0_0 = arith.constant 0 : index
    %c0_1 = arith.constant 0 : index
    %0 = vector.load %arg2[%c0, %c0_0, %c0_1] : memref<1x256x256xbf16, #tpu.memory_space<vmem>>, vector<1x256x256xbf16>
    %1 = vector.shape_cast %0 : vector<1x256x256xbf16> to vector<256x256xbf16>
    %c0_2 = arith.constant 0 : index
    %c0_3 = arith.constant 0 : index
    %2 = vector.load %arg3[%c0_2, %c0_3] : memref<256x768xbf16, #tpu.memory_space<vmem>>, vector<256x768xbf16>
    %cst = arith.constant dense<0.000000e+00> : vector<256x768xf32>
    %3 = tpu.matmul %1, %2, %cst {dimension_numbers = #tpu.dot_dimension_numbers<[1], [0], [0], [1], [0, 0, 1, 1], [], []>} : vector<256x256xbf16>, vector<256x768xbf16>, vector<256x768xf32> -> vector<256x768xf32>
    %4 = arith.truncf %3 : vector<256x768xf32> to vector<256x768xbf16>
    %c0_4 = arith.constant 0 : index
    %c0_5 = arith.constant 0 : index
    %c0_6 = arith.constant 0 : index
    %5 = vector.load %arg4[%c0_4, %c0_5, %c0_6] : memref<1x256x768xbf16, #tpu.memory_space<vmem>>, vector<1x256x768xbf16>
    %6 = vector.shape_cast %5 : vector<1x256x768xbf16> to vector<256x768xbf16>
    %7 = vector.shape_cast %4 : vector<256x768xbf16> to vector<1x256x768xbf16>
    tpu.vector_store %arg4[%c0_4, %c0_5, %c0_6], %7 {strides = array<i32>} : memref<1x256x768xbf16, #tpu.memory_space<vmem>>, vector<1x256x768xbf16>,
    return
  }
  func.func @transform_0(%arg0: i32, %arg1: i32) -> (i32, i32, i32) {
    %c0_i32 = arith.constant 0 : i32
    %c0_i32_0 = arith.constant 0 : i32
    return %arg0, %arg1, %c0_i32 : i32, i32, i32
  }
  func.func @transform_1(%arg0: i32, %arg1: i32) -> (i32, i32) {
    %c0_i32 = arith.constant 0 : i32
    %c0_i32_0 = arith.constant 0 : i32
    %c0_i32_1 = arith.constant 0 : i32
    return %c0_i32, %c0_i32_0 : i32, i32
  }
  func.func @transform_2(%arg0: i32, %arg1: i32) -> (i32, i32, i32) {
    %c0_i32 = arith.constant 0 : i32
    %c0_i32_0 = arith.constant 0 : i32
    return %arg0, %arg1, %c0_i32 : i32, i32, i32
  }
}

</mosaic_0001>

<llo_original>
// kernel: tpu_custom_call.1
$region0: #{tpu_custom_call.1}
  #allocation0 [shape = 'u32[]', space=smem, size = 0x4, offset = 0x4, fixed_abs, tag = 'smem constant byte address 0x4 - core index']
  #allocation1 [shape = 'u32[144,128]{1,0:T(1,128)}', space=vmem, size = 0x12000, scoped, tag = 'internal scratch']
  %s0 = inlined_call_operand.hbm [shape: bf16[2,256,256], index: 0, kind: input, shape index: {}]
  %s1 = inlined_call_operand.hbm [shape: bf16[256,768], index: 1, kind: input, shape index: {}]
  %s2 = inlined_call_operand.hbm [shape: bf16[2,256,768], index: 2, kind: output, shape index: {}]
  %s3 = sld [smem:[#allocation0]]
  $region49: #{tpu_custom_call.1} parent=0
    _
  %s5 = ssub.s32 1, %s3
  %s6 = scalar_select 0, %s5, %s3
  $region1: #{tpu_custom_call.1} parent=0
    #allocation2 [shape = 'u8[262144]{0}', space=vmem, size = 0x40000, scoped, tag = 'input window, operand 0']
    #allocation3 [shape = 's32[2]{0}', space=sflag, size = 0x8, scoped, tag = 'scoped memory for tpu_custom_call.1']
    #allocation4 [shape = 's32[2]{0}', space=sflag, size = 0x8, scoped, tag = 'scoped memory for tpu_custom_call.1']
    #allocation5 [shape = 'u8[393216]{0}', space=vmem, size = 0x60000, scoped, tag = 'input window, operand 1, single buffered']
    #allocation6 [shape = 's32[1]{0}', space=sflag, size = 0x4, scoped, tag = 'scoped memory for tpu_custom_call.1']
    #allocation7 [shape = 'u8[786432]{0}', space=vmem, size = 0xc0000, scoped, tag = 'output window, operand 0']
    %7 = vsyncpa [#allocation3], 0
    %s8 = scalar_lea.sflag [#allocation3], 1
    %9 = vsyncpa %s8, 0
    %10 = vsyncpa [#allocation6], 0
    %11 = vsyncpa [#allocation4], 0
    %s12 = scalar_lea.sflag [#allocation4], 1
    %13 = vsyncpa %s12, 0
    loop: start=0, step=1, limit=4
    $region2: #{tpu_custom_call.1} parent=1 // loop_pre_header
      _
    $region3: #{tpu_custom_call.1} parent=1 // loop_header
      %s15 = sphi 0, %s19
      %p16 = scmp.ge.s32.totalorder %s15, 4
      %s22 = sphi 0, %s34
      %s23 = sphi 0, %s30
      %s24 = sphi 0, %s22
      %s25 = sphi 0, %s23
      %s26 = sphi 0, %s24
      %s27 = sphi 0, %s25
      %s39 = sphi 0, %s41
      %s42 = sphi 0, %s39
      %s43 = sphi 0, %s42
      %s59 = sphi 0, %s43
      %s63 = sphi 0, %s63
      %s65 = sphi 0, %s63
      %s66 = sphi 0, %s65
      %s80 = sphi 0, %s66
      %s88 = sphi 0, %s90
      %s91 = sphi 0, %s88
      %s92 = sphi 0, %s91
      %s108 = sphi 0, %s92
    $region4: #{tpu_custom_call.1} parent=1 // loop_header_branch
      %18 = sbr.rel (%p16) target = $region8
    $region5: #{tpu_custom_call.1} parent=1 // loop_body
      %s20 = ssub.s32 %s15, 1
      %s21 = ssub.s32 %s15, 2
      %s28 = sadd.s32 1, %s23
      %p29 = scmp.ge.s32.totalorder %s28, 1
      %s30 = scalar_select %p29, 0, %s28
      %s31 = sadd.s32 1, %s22
      %s32 = scalar_select %p29, %s31, %s22
      %p33 = scmp.ge.s32.totalorder %s32, 2
      %s34 = scalar_select %p33, 0, %s32
      %s35 = ssub.s32 %s22, %s34
      %s36 = ssub.s32 %s23, %s30
      %s37 = sor.u32 %s35, %s36
      %p38 = scmp.eq.s32.totalorder %s37, 0
      %s40 = sadd.s32 %s39, 1
      %s41 = scalar_select %p38, %s39, %s40
      %p44 = pneg %p38
      %p45 = scmp.eq.s32.totalorder %s15, 1
      %p46 = por %p44, %p45
      %p47 = scmp.ne.s32.totalorder %s39, %s42
      %p48 = scmp.eq.s32.totalorder %s15, 0
      %p49 = por %p47, %p48
      %p50 = scmp.ne.s32.totalorder %s39, %s42
      %p51 = scmp.eq.s32.totalorder %s20, 1
      %p52 = por %p50, %p51
      %p53 = scmp.ne.s32.totalorder %s42, %s43
      %p54 = scmp.eq.s32.totalorder %s20, 0
      %p55 = por %p53, %p54
      %p56 = scmp.ne.s32.totalorder %s42, %s43
      %p57 = scmp.eq.s32.totalorder %s21, 1
      %p58 = por %p56, %p57
      %p60 = scmp.ne.s32.totalorder %s43, %s59
      %p61 = scmp.eq.s32.totalorder %s21, 0
      %p62 = por %p60, %p61
      %s64 = sadd.s32 %s63, 1
      %p67 = scmp.eq.s32.totalorder %s15, 1
      %p68 = scmp.ne.s32.totalorder %s63, %s65
      %p69 = scmp.eq.s32.totalorder %s15, 0
      %p70 = por %p68, %p69
      %p71 = scmp.ne.s32.totalorder %s63, %s65
      %p72 = scmp.eq.s32.totalorder %s20, 1
      %p73 = por %p71, %p72
      %p74 = scmp.ne.s32.totalorder %s65, %s66
      %p75 = scmp.eq.s32.totalorder %s20, 0
      %p76 = por %p74, %p75
      %p77 = scmp.ne.s32.totalorder %s65, %s66
      %p78 = scmp.eq.s32.totalorder %s21, 1
      %p79 = por %p77, %p78
      %p81 = scmp.ne.s32.totalorder %s66, %s80
      %p82 = scmp.eq.s32.totalorder %s21, 0
      %p83 = por %p81, %p82
      %s84 = ssub.s32 %s22, %s34
      %s85 = ssub.s32 %s23, %s30
      %s86 = sor.u32 %s84, %s85
      %p87 = scmp.eq.s32.totalorder %s86, 0
      %s89 = sadd.s32 %s88, 1
      %s90 = scalar_select %p87, %s88, %s89
      %p93 = pneg %p87
      %p94 = scmp.eq.s32.totalorder %s15, 1
      %p95 = por %p93, %p94
      %p96 = scmp.ne.s32.totalorder %s88, %s91
      %p97 = scmp.eq.s32.totalorder %s15, 0
      %p98 = por %p96, %p97
      %p99 = scmp.ne.s32.totalorder %s88, %s91
      %p100 = scmp.eq.s32.totalorder %s20, 1
      %p101 = por %p99, %p100
      %p102 = scmp.ne.s32.totalorder %s91, %s92
      %p103 = scmp.eq.s32.totalorder %s20, 0
      %p104 = por %p102, %p103
      %p105 = scmp.ne.s32.totalorder %s91, %s92
      %p106 = scmp.eq.s32.totalorder %s21, 1
      %p107 = por %p105, %p106
      %p109 = scmp.ne.s32.totalorder %s92, %s108
      %p110 = scmp.eq.s32.totalorder %s21, 0
      %p111 = por %p109, %p110
      %p112 = scmp.le.s32.totalorder 1, %s15
      %p113 = scmp.lt.s32.totalorder %s15, 3
      %p114 = pnand %p112, %p113
      %p115 = pneg %p114
      // Predicated region
      $region9: #{tpu_custom_call.1} parent=5 // pred_check
        _
      $region10: #{tpu_custom_call.1} parent=5 // pred_check_branch
        %117 = sbr.rel (%p114) target = $region12
      $region11: #{tpu_custom_call.1} parent=5 // pred_region
        %s118 = ssub.s32 %s15, 1
        // Predicated region
        $region13: #{tpu_custom_call.1} parent=11 // pred_check
          %p119 = pneg %p76
        $region14: #{tpu_custom_call.1} parent=11 // pred_check_branch
          %121 = sbr.rel (%p119) target = $region16
        $region15: #{tpu_custom_call.1} parent=11 // pred_region
          %s123 = ssub.s32 12288, 12288
          %124 = vsyncadd [#allocation6], %s123
          %s125 = sshll.u32 [#allocation5], 4
          %s126 = int_to_ptr.vmem [resolvable:$true] %s125
          %131 = dma.hbm_to_vmem [thread:$0]  %s1, 12288, %s126, [#allocation6], 384, 384, 24
        $region16: #{tpu_custom_call.1} parent=11 // pred_fallthru
          _
      $region12: #{tpu_custom_call.1} parent=5 // pred_fallthru
        _
      %p132 = scmp.lt.s32.totalorder %s15, 2
      // Predicated region
      $region17: #{tpu_custom_call.1} parent=5 // pred_check
        %p133 = pneg %p132
      $region18: #{tpu_custom_call.1} parent=5 // pred_check_branch
        %135 = sbr.rel (%p133) target = $region20
      $region19: #{tpu_custom_call.1} parent=5 // pred_region
        // Predicated region
        $region21: #{tpu_custom_call.1} parent=19 // pred_check
          %p136 = pneg %p49
        $region22: #{tpu_custom_call.1} parent=19 // pred_check_branch
          %138 = sbr.rel (%p136) target = $region24
        $region23: #{tpu_custom_call.1} parent=19 // pred_region
          %s139 = sand.u32 %s39, 1
          %s140 = scalar_lea.sflag [#allocation3], %s139
          %s141 = sand.u32 %s39, 1
          %s142 = smul.addr %s141, 256
          %s143 = scalar_lea.vmem [#allocation2], %s142
          %s144 = smul.u32 32, %s23
          %s146 = ssub.s32 4096, 4096
          %147 = vsyncadd %s140, %s146
          %s148 = smul.addr %s144, 2
          %s149 = smul.addr %s22, 64
          %s150 = sadd.s32 %s148, %s149
          %s151 = smul.addr %s150, 64
          %s152 = scalar_lea.hbm %s0, %s151
          %s153 = sshll.u32 %s143, 4
          %s154 = int_to_ptr.vmem [resolvable:$true] %s153
          %159 = dma.hbm_to_vmem [thread:$0]  %s152, 4096, %s154, %s140, 128, 128, 8
        $region24: #{tpu_custom_call.1} parent=19 // pred_fallthru
          _
      $region20: #{tpu_custom_call.1} parent=5 // pred_fallthru
        _
      %p160 = scmp.le.s32.totalorder 1, %s15
      %p161 = scmp.lt.s32.totalorder %s15, 3
      %p162 = pnand %p160, %p161
      %p163 = pneg %p162
      // Predicated region
      $region25: #{tpu_custom_call.1} parent=5 // pred_check
        _
      $region26: #{tpu_custom_call.1} parent=5 // pred_check_branch
        %165 = sbr.rel (%p162) target = $region28
      $region27: #{tpu_custom_call.1} parent=5 // pred_region
        %s166 = ssub.s32 %s15, 1
        %s167 = sand.u32 %s42, 1
        %s168 = scalar_lea.sflag [#allocation3], %s167
        %s169 = sand.u32 %s42, 1
        %s170 = smul.addr %s169, 256
        %s171 = scalar_lea.vmem [#allocation2], %s170
        // Predicated region
        $region29: #{tpu_custom_call.1} parent=27 // pred_check
          %p172 = pneg %p55
        $region30: #{tpu_custom_call.1} parent=27 // pred_check_branch
          %174 = sbr.rel (%p172) target = $region32
        $region31: #{tpu_custom_call.1} parent=27 // pred_region
          %175 = dma.done %s168, 4096
        $region32: #{tpu_custom_call.1} parent=27 // pred_fallthru
          _
        // Predicated region
        $region33: #{tpu_custom_call.1} parent=27 // pred_check
          %p176 = pneg %p76
        $region34: #{tpu_custom_call.1} parent=27 // pred_check_branch
          %178 = sbr.rel (%p176) target = $region36
        $region35: #{tpu_custom_call.1} parent=27 // pred_region
          %179 = dma.done [#allocation6], 12288
        $region36: #{tpu_custom_call.1} parent=27 // pred_fallthru
          _
        %s180 = sand.u32 %s42, 1
        %s181 = scalar_lea.sflag [#allocation3], %s180
        %s182 = sand.u32 %s42, 1
        %s183 = smul.addr %s182, 256
        %s184 = scalar_lea.vmem [#allocation2], %s183
        %p185 = pneg %p55
        %p186 = pneg %p52
        %p187 = pneg %p76
        %p188 = pneg %p73
        %p189 = pneg %p104
        %p190 = pneg %p101
        %s191 = sand.u32 %s91, 1
        %s192 = scalar_lea.sflag [#allocation4], %s191
        %s193 = sand.u32 %s91, 1
        %s194 = smul.addr %s193, 768
        %s195 = scalar_lea.vmem [#allocation7], %s194
        %s196 = smul.u32 32, %s25
        %s197 = smul.u32 32, %s25
        %v198 = vld [vmem:[%s171] sm:$0xff]
        %v199 = vld [vmem:[%s171 + $0x8] sm:$0xff]
        %v200 = vld [vmem:[%s171 + $0x10] sm:$0xff]
        %v201 = vld [vmem:[%s171 + $0x18] sm:$0xff]
        %v202 = vld [vmem:[%s171 + $0x20] sm:$0xff]
        %v203 = vld [vmem:[%s171 + $0x28] sm:$0xff]
        %v204 = vld [vmem:[%s171 + $0x30] sm:$0xff]
        %v205 = vld [vmem:[%s171 + $0x38] sm:$0xff]
        %v206 = vld [vmem:[%s171 + $0x40] sm:$0xff]
        %v207 = vld [vmem:[%s171 + $0x48] sm:$0xff]
        %v208 = vld [vmem:[%s171 + $0x50] sm:$0xff]
        %v209 = vld [vmem:[%s171 + $0x58] sm:$0xff]
        %v210 = vld [vmem:[%s171 + $0x60] sm:$0xff]
        %v211 = vld [vmem:[%s171 + $0x68] sm:$0xff]
        %v212 = vld [vmem:[%s171 + $0x70] sm:$0xff]
        %v213 = vld [vmem:[%s171 + $0x78] sm:$0xff]
        %v214 = vld [vmem:[%s171 + $0x80] sm:$0xff]
        %v215 = vld [vmem:[%s171 + $0x88] sm:$0xff]
        %v216 = vld [vmem:[%s171 + $0x90] sm:$0xff]
        %v217 = vld [vmem:[%s171 + $0x98] sm:$0xff]
        %v218 = vld [vmem:[%s171 + $0xa0] sm:$0xff]
        %v219 = vld [vmem:[%s171 + $0xa8] sm:$0xff]
        %v220 = vld [vmem:[%s171 + $0xb0] sm:$0xff]
        %v221 = vld [vmem:[%s171 + $0xb8] sm:$0xff]
        %v222 = vld [vmem:[%s171 + $0xc0] sm:$0xff]
        %v223 = vld [vmem:[%s171 + $0xc8] sm:$0xff]
        %v224 = vld [vmem:[%s171 + $0xd0] sm:$0xff]
        %v225 = vld [vmem:[%s171 + $0xd8] sm:$0xff]
        %v226 = vld [vmem:[%s171 + $0xe0] sm:$0xff]
        %v227 = vld [vmem:[%s171 + $0xe8] sm:$0xff]
        %v228 = vld [vmem:[%s171 + $0xf0] sm:$0xff]
        %v229 = vld [vmem:[%s171 + $0xf8] sm:$0xff]
        %v230 = vld [vmem:[#allocation5] sm:$0xff]
        %v231 = vld [vmem:[#allocation5 + $0x8] sm:$0xff]
        %v232 = vld [vmem:[#allocation5 + $0x10] sm:$0xff]
        %v233 = vld [vmem:[#allocation5 + $0x18] sm:$0xff]
        %v234 = vld [vmem:[#allocation5 + $0x20] sm:$0xff]
        %v235 = vld [vmem:[#allocation5 + $0x28] sm:$0xff]
        %v236 = vld [vmem:[#allocation5 + $0x30] sm:$0xff]
        %v237 = vld [vmem:[#allocation5 + $0x38] sm:$0xff]
        %v238 = vld [vmem:[#allocation5 + $0x40] sm:$0xff]
        %v239 = vld [vmem:[#allocation5 + $0x48] sm:$0xff]
        %v240 = vld [vmem:[#allocation5 + $0x50] sm:$0xff]
        %v241 = vld [vmem:[#allocation5 + $0x58] sm:$0xff]
        %v242 = vld [vmem:[#allocation5 + $0x60] sm:$0xff]
        %v243 = vld [vmem:[#allocation5 + $0x68] sm:$0xff]
        %v244 = vld [vmem:[#allocation5 + $0x70] sm:$0xff]
        %v245 = vld [vmem:[#allocation5 + $0x78] sm:$0xff]
        %v246 = vld [vmem:[#allocation5 + $0x80] sm:$0xff]
        %v247 = vld [vmem:[#allocation5 + $0x88] sm:$0xff]
        %v248 = vld [vmem:[#allocation5 + $0x90] sm:$0xff]
        %v249 = vld [vmem:[#allocation5 + $0x98] sm:$0xff]
        %v250 = vld [vmem:[#allocation5 + $0xa0] sm:$0xff]
        %v251 = vld [vmem:[#allocation5 + $0xa8] sm:$0xff]
        %v252 = vld [vmem:[#allocation5 + $0xb0] sm:$0xff]
        %v253 = vld [vmem:[#allocation5 + $0xb8] sm:$0xff]
        %v254 = vld [vmem:[#allocation5 + $0xc0] sm:$0xff]
        %v255 = vld [vmem:[#allocation5 + $0xc8] sm:$0xff]
        %v256 = vld [vmem:[#allocation5 + $0xd0] sm:$0xff]
        %v257 = vld [vmem:[#allocation5 + $0xd8] sm:$0xff]
        %v258 = vld [vmem:[#allocation5 + $0xe0] sm:$0xff]
        %v259 = vld [vmem:[#allocation5 + $0xe8] sm:$0xff]
        %v260 = vld [vmem:[#allocation5 + $0xf0] sm:$0xff]
        %v261 = vld [vmem:[#allocation5 + $0xf8] sm:$0xff]
        %v262 = vld [vmem:[#allocation5 + $0x100] sm:$0xff]
        %v263 = vld [vmem:[#allocation5 + $0x108] sm:$0xff]
        %v264 = vld [vmem:[#allocation5 + $0x110] sm:$0xff]
        %v265 = vld [vmem:[#allocation5 + $0x118] sm:$0xff]
        %v266 = vld [vmem:[#allocation5 + $0x120] sm:$0xff]
        %v267 = vld [vmem:[#allocation5 + $0x128] sm:$0xff]
        %v268 = vld [vmem:[#allocation5 + $0x130] sm:$0xff]
        %v269 = vld [vmem:[#allocation5 + $0x138] sm:$0xff]
        %v270 = vld [vmem:[#allocation5 + $0x140] sm:$0xff]
        %v271 = vld [vmem:[#allocation5 + $0x148] sm:$0xff]
        %v272 = vld [vmem:[#allocation5 + $0x150] sm:$0xff]
        %v273 = vld [vmem:[#allocation5 + $0x158] sm:$0xff]
        %v274 = vld [vmem:[#allocation5 + $0x160] sm:$0xff]
        %v275 = vld [vmem:[#allocation5 + $0x168] sm:$0xff]
        %v276 = vld [vmem:[#allocation5 + $0x170] sm:$0xff]
        %v277 = vld [vmem:[#allocation5 + $0x178] sm:$0xff]
        %v278 = vld [vmem:[#allocation5 + $0x180] sm:$0xff]
        %v279 = vld [vmem:[#allocation5 + $0x188] sm:$0xff]
        %v280 = vld [vmem:[#allocation5 + $0x190] sm:$0xff]
        %v281 = vld [vmem:[#allocation5 + $0x198] sm:$0xff]
        %v282 = vld [vmem:[#allocation5 + $0x1a0] sm:$0xff]
        %v283 = vld [vmem:[#allocation5 + $0x1a8] sm:$0xff]
        %v284 = vld [vmem:[#allocation5 + $0x1b0] sm:$0xff]
        %v285 = vld [vmem:[#allocation5 + $0x1b8] sm:$0xff]
        %v286 = vld [vmem:[#allocation5 + $0x1c0] sm:$0xff]
        %v287 = vld [vmem:[#allocation5 + $0x1c8] sm:$0xff]
        %v288 = vld [vmem:[#allocation5 + $0x1d0] sm:$0xff]
        %v289 = vld [vmem:[#allocation5 + $0x1d8] sm:$0xff]
        %v290 = vld [vmem:[#allocation5 + $0x1e0] sm:$0xff]
        %v291 = vld [vmem:[#allocation5 + $0x1e8] sm:$0xff]
        %v292 = vld [vmem:[#allocation5 + $0x1f0] sm:$0xff]
        %v293 = vld [vmem:[#allocation5 + $0x1f8] sm:$0xff]
        %v294 = vld [vmem:[#allocation5 + $0x200] sm:$0xff]
        %v295 = vld [vmem:[#allocation5 + $0x208] sm:$0xff]
        %v296 = vld [vmem:[#allocation5 + $0x210] sm:$0xff]
        %v297 = vld [vmem:[#allocation5 + $0x218] sm:$0xff]
        %v298 = vld [vmem:[#allocation5 + $0x220] sm:$0xff]
        %v299 = vld [vmem:[#allocation5 + $0x228] sm:$0xff]
        %v300 = vld [vmem:[#allocation5 + $0x230] sm:$0xff]
        %v301 = vld [vmem:[#allocation5 + $0x238] sm:$0xff]
        %v302 = vld [vmem:[#allocation5 + $0x240] sm:$0xff]
        %v303 = vld [vmem:[#allocation5 + $0x248] sm:$0xff]
        %v304 = vld [vmem:[#allocation5 + $0x250] sm:$0xff]
        %v305 = vld [vmem:[#allocation5 + $0x258] sm:$0xff]
        %v306 = vld [vmem:[#allocation5 + $0x260] sm:$0xff]
        %v307 = vld [vmem:[#allocation5 + $0x268] sm:$0xff]
        %v308 = vld [vmem:[#allocation5 + $0x270] sm:$0xff]
        %v309 = vld [vmem:[#allocation5 + $0x278] sm:$0xff]
        %v310 = vld [vmem:[#allocation5 + $0x280] sm:$0xff]
        %v311 = vld [vmem:[#allocation5 + $0x288] sm:$0xff]
        %v312 = vld [vmem:[#allocation5 + $0x290] sm:$0xff]
        %v313 = vld [vmem:[#allocation5 + $0x298] sm:$0xff]
        %v314 = vld [vmem:[#allocation5 + $0x2a0] sm:$0xff]
        %v315 = vld [vmem:[#allocation5 + $0x2a8] sm:$0xff]
        %v316 = vld [vmem:[#allocation5 + $0x2b0] sm:$0xff]
        %v317 = vld [vmem:[#allocation5 + $0x2b8] sm:$0xff]
        %v318 = vld [vmem:[#allocation5 + $0x2c0] sm:$0xff]
        %v319 = vld [vmem:[#allocation5 + $0x2c8] sm:$0xff]
        %v320 = vld [vmem:[#allocation5 + $0x2d0] sm:$0xff]
        %v321 = vld [vmem:[#allocation5 + $0x2d8] sm:$0xff]
        %v322 = vld [vmem:[#allocation5 + $0x2e0] sm:$0xff]
        %v323 = vld [vmem:[#allocation5 + $0x2e8] sm:$0xff]
        %v324 = vld [vmem:[#allocation5 + $0x2f0] sm:$0xff]
        %v325 = vld [vmem:[#allocation5 + $0x2f8] sm:$0xff]
        %v358 = vunpack.c.l.b16 %v198
        %v359 = vunpack.c.h.b16 %v198
        %v360 = vunpack.c.l.b16 %v199
        %v361 = vunpack.c.h.b16 %v199
        %v362 = vunpack.c.l.b16 %v200
        %v363 = vunpack.c.h.b16 %v200
        %v364 = vunpack.c.l.b16 %v201
        %v365 = vunpack.c.h.b16 %v201
        %v366 = vunpack.c.l.b16 %v202
        %v367 = vunpack.c.h.b16 %v202
        %v368 = vunpack.c.l.b16 %v203
        %v369 = vunpack.c.h.b16 %v203
        %v370 = vunpack.c.l.b16 %v204
        %v371 = vunpack.c.h.b16 %v204
        %v372 = vunpack.c.l.b16 %v205
        %v373 = vunpack.c.h.b16 %v205
        %v374 = vunpack.c.l.b16 %v206
        %v375 = vunpack.c.h.b16 %v206
        %v376 = vunpack.c.l.b16 %v207
        %v377 = vunpack.c.h.b16 %v207
        %v378 = vunpack.c.l.b16 %v208
        %v379 = vunpack.c.h.b16 %v208
        %v380 = vunpack.c.l.b16 %v209
        %v381 = vunpack.c.h.b16 %v209
        %v382 = vunpack.c.l.b16 %v210
        %v383 = vunpack.c.h.b16 %v210
        %v384 = vunpack.c.l.b16 %v211
        %v385 = vunpack.c.h.b16 %v211
        %v386 = vunpack.c.l.b16 %v212
        %v387 = vunpack.c.h.b16 %v212
        %v388 = vunpack.c.l.b16 %v213
        %v389 = vunpack.c.h.b16 %v213
        %v390 = vunpack.c.l.b16 %v214
        %v391 = vunpack.c.h.b16 %v214
        %v392 = vunpack.c.l.b16 %v215
        %v393 = vunpack.c.h.b16 %v215
        %v394 = vunpack.c.l.b16 %v216
        %v395 = vunpack.c.h.b16 %v216
        %v396 = vunpack.c.l.b16 %v217
        %v397 = vunpack.c.h.b16 %v217
        %v398 = vunpack.c.l.b16 %v218
        %v399 = vunpack.c.h.b16 %v218
        %v400 = vunpack.c.l.b16 %v219
        %v401 = vunpack.c.h.b16 %v219
        %v402 = vunpack.c.l.b16 %v220
        %v403 = vunpack.c.h.b16 %v220
        %v404 = vunpack.c.l.b16 %v221
        %v405 = vunpack.c.h.b16 %v221
        %v406 = vunpack.c.l.b16 %v222
        %v407 = vunpack.c.h.b16 %v222
        %v408 = vunpack.c.l.b16 %v223
        %v409 = vunpack.c.h.b16 %v223
        %v410 = vunpack.c.l.b16 %v224
        %v411 = vunpack.c.h.b16 %v224
        %v412 = vunpack.c.l.b16 %v225
        %v413 = vunpack.c.h.b16 %v225
        %v414 = vunpack.c.l.b16 %v226
        %v415 = vunpack.c.h.b16 %v226
        %v416 = vunpack.c.l.b16 %v227
        %v417 = vunpack.c.h.b16 %v227
        %v418 = vunpack.c.l.b16 %v228
        %v419 = vunpack.c.h.b16 %v228
        %v420 = vunpack.c.l.b16 %v229
        %v421 = vunpack.c.h.b16 %v229
        %v422 = vpack.c.b16 %v360, %v358
        %v423 = vpack.c.b16 %v361, %v359
        %v424 = vpack.c.b16 %v364, %v362
        %v425 = vpack.c.b16 %v365, %v363
        %v426 = vpack.c.b16 %v368, %v366
        %v427 = vpack.c.b16 %v369, %v367
        %v428 = vpack.c.b16 %v372, %v370
        %v429 = vpack.c.b16 %v373, %v371
        %v430 = vpack.c.b16 %v376, %v374
        %v431 = vpack.c.b16 %v377, %v375
        %v432 = vpack.c.b16 %v380, %v378
        %v433 = vpack.c.b16 %v381, %v379
        %v434 = vpack.c.b16 %v384, %v382
        %v435 = vpack.c.b16 %v385, %v383
        %v436 = vpack.c.b16 %v388, %v386
        %v437 = vpack.c.b16 %v389, %v387
        %v438 = vpack.c.b16 %v392, %v390
        %v439 = vpack.c.b16 %v393, %v391
        %v440 = vpack.c.b16 %v396, %v394
        %v441 = vpack.c.b16 %v397, %v395
        %v442 = vpack.c.b16 %v400, %v398
        %v443 = vpack.c.b16 %v401, %v399
        %v444 = vpack.c.b16 %v404, %v402
        %v445 = vpack.c.b16 %v405, %v403
        %v446 = vpack.c.b16 %v408, %v406
        %v447 = vpack.c.b16 %v409, %v407
        %v448 = vpack.c.b16 %v412, %v410
        %v449 = vpack.c.b16 %v413, %v411
        %v450 = vpack.c.b16 %v416, %v414
        %v451 = vpack.c.b16 %v417, %v415
        %v452 = vpack.c.b16 %v420, %v418
        %v453 = vpack.c.b16 %v421, %v419
        %v582 = vunpack.c.l.b16 %v230
        %v583 = vunpack.c.h.b16 %v230
        %v584 = vunpack.c.l.b16 %v231
        %v585 = vunpack.c.h.b16 %v231
        %v586 = vunpack.c.l.b16 %v232
        %v587 = vunpack.c.h.b16 %v232
        %v588 = vunpack.c.l.b16 %v233
        %v589 = vunpack.c.h.b16 %v233
        %v590 = vunpack.c.l.b16 %v234
        %v591 = vunpack.c.h.b16 %v234
        %v592 = vunpack.c.l.b16 %v235
        %v593 = vunpack.c.h.b16 %v235
        %v594 = vunpack.c.l.b16 %v236
        %v595 = vunpack.c.h.b16 %v236
        %v596 = vunpack.c.l.b16 %v237
        %v597 = vunpack.c.h.b16 %v237
        %v598 = vunpack.c.l.b16 %v238
        %v599 = vunpack.c.h.b16 %v238
        %v600 = vunpack.c.l.b16 %v239
        %v601 = vunpack.c.h.b16 %v239
        %v602 = vunpack.c.l.b16 %v240
        %v603 = vunpack.c.h.b16 %v240
        %v604 = vunpack.c.l.b16 %v241
        %v605 = vunpack.c.h.b16 %v241
        %v606 = vunpack.c.l.b16 %v242
        %v607 = vunpack.c.h.b16 %v242
        %v608 = vunpack.c.l.b16 %v243
        %v609 = vunpack.c.h.b16 %v243
        %v610 = vunpack.c.l.b16 %v244
        %v611 = vunpack.c.h.b16 %v244
        %v612 = vunpack.c.l.b16 %v245
        %v613 = vunpack.c.h.b16 %v245
        %v614 = vunpack.c.l.b16 %v246
        %v615 = vunpack.c.h.b16 %v246
        %v616 = vunpack.c.l.b16 %v247
        %v617 = vunpack.c.h.b16 %v247
        %v618 = vunpack.c.l.b16 %v248
        %v619 = vunpack.c.h.b16 %v248
        %v620 = vunpack.c.l.b16 %v249
        %v621 = vunpack.c.h.b16 %v249
        %v622 = vunpack.c.l.b16 %v250
        %v623 = vunpack.c.h.b16 %v250
        %v624 = vunpack.c.l.b16 %v251
        %v625 = vunpack.c.h.b16 %v251
        %v626 = vunpack.c.l.b16 %v252
        %v627 = vunpack.c.h.b16 %v252
        %v628 = vunpack.c.l.b16 %v253
        %v629 = vunpack.c.h.b16 %v253
        %v630 = vunpack.c.l.b16 %v254
        %v631 = vunpack.c.h.b16 %v254
        %v632 = vunpack.c.l.b16 %v255
        %v633 = vunpack.c.h.b16 %v255
        %v634 = vunpack.c.l.b16 %v256
        %v635 = vunpack.c.h.b16 %v256
        %v636 = vunpack.c.l.b16 %v257
        %v637 = vunpack.c.h.b16 %v257
        %v638 = vunpack.c.l.b16 %v258
        %v639 = vunpack.c.h.b16 %v258
        %v640 = vunpack.c.l.b16 %v259
        %v641 = vunpack.c.h.b16 %v259
        %v642 = vunpack.c.l.b16 %v260
        %v643 = vunpack.c.h.b16 %v260
        %v644 = vunpack.c.l.b16 %v261
        %v645 = vunpack.c.h.b16 %v261
        %v646 = vunpack.c.l.b16 %v262
        %v647 = vunpack.c.h.b16 %v262
        %v648 = vunpack.c.l.b16 %v263
        %v649 = vunpack.c.h.b16 %v263
        %v650 = vunpack.c.l.b16 %v264
        %v651 = vunpack.c.h.b16 %v264
        %v652 = vunpack.c.l.b16 %v265
        %v653 = vunpack.c.h.b16 %v265
        %v654 = vunpack.c.l.b16 %v266
        %v655 = vunpack.c.h.b16 %v266
        %v656 = vunpack.c.l.b16 %v267
        %v657 = vunpack.c.h.b16 %v267
        %v658 = vunpack.c.l.b16 %v268
        %v659 = vunpack.c.h.b16 %v268
        %v660 = vunpack.c.l.b16 %v269
        %v661 = vunpack.c.h.b16 %v269
        %v662 = vunpack.c.l.b16 %v270
        %v663 = vunpack.c.h.b16 %v270
        %v664 = vunpack.c.l.b16 %v271
        %v665 = vunpack.c.h.b16 %v271
        %v666 = vunpack.c.l.b16 %v272
        %v667 = vunpack.c.h.b16 %v272
        %v668 = vunpack.c.l.b16 %v273
        %v669 = vunpack.c.h.b16 %v273
        %v670 = vunpack.c.l.b16 %v274
        %v671 = vunpack.c.h.b16 %v274
        %v672 = vunpack.c.l.b16 %v275
        %v673 = vunpack.c.h.b16 %v275
        %v674 = vunpack.c.l.b16 %v276
        %v675 = vunpack.c.h.b16 %v276
        %v676 = vunpack.c.l.b16 %v277
        %v677 = vunpack.c.h.b16 %v277
        %v678 = vunpack.c.l.b16 %v278
        %v679 = vunpack.c.h.b16 %v278
        %v680 = vunpack.c.l.b16 %v279
        %v681 = vunpack.c.h.b16 %v279
        %v682 = vunpack.c.l.b16 %v280
        %v683 = vunpack.c.h.b16 %v280
        %v684 = vunpack.c.l.b16 %v281
        %v685 = vunpack.c.h.b16 %v281
        %v686 = vunpack.c.l.b16 %v282
        %v687 = vunpack.c.h.b16 %v282
        %v688 = vunpack.c.l.b16 %v283
        %v689 = vunpack.c.h.b16 %v283
        %v690 = vunpack.c.l.b16 %v284
        %v691 = vunpack.c.h.b16 %v284
        %v692 = vunpack.c.l.b16 %v285
        %v693 = vunpack.c.h.b16 %v285
        %v694 = vunpack.c.l.b16 %v286
        %v695 = vunpack.c.h.b16 %v286
        %v696 = vunpack.c.l.b16 %v287
        %v697 = vunpack.c.h.b16 %v287
        %v698 = vunpack.c.l.b16 %v288
        %v699 = vunpack.c.h.b16 %v288
        %v700 = vunpack.c.l.b16 %v289
        %v701 = vunpack.c.h.b16 %v289
        %v702 = vunpack.c.l.b16 %v290
        %v703 = vunpack.c.h.b16 %v290
        %v704 = vunpack.c.l.b16 %v291
        %v705 = vunpack.c.h.b16 %v291
        %v706 = vunpack.c.l.b16 %v292
        %v707 = vunpack.c.h.b16 %v292
        %v708 = vunpack.c.l.b16 %v293
        %v709 = vunpack.c.h.b16 %v293
        %v710 = vunpack.c.l.b16 %v294
        %v711 = vunpack.c.h.b16 %v294
        %v712 = vunpack.c.l.b16 %v295
        %v713 = vunpack.c.h.b16 %v295
        %v714 = vunpack.c.l.b16 %v296
        %v715 = vunpack.c.h.b16 %v296
        %v716 = vunpack.c.l.b16 %v297
        %v717 = vunpack.c.h.b16 %v297
        %v718 = vunpack.c.l.b16 %v298
        %v719 = vunpack.c.h.b16 %v298
        %v720 = vunpack.c.l.b16 %v299
        %v721 = vunpack.c.h.b16 %v299
        %v722 = vunpack.c.l.b16 %v300
        %v723 = vunpack.c.h.b16 %v300
        %v724 = vunpack.c.l.b16 %v301
        %v725 = vunpack.c.h.b16 %v301
        %v726 = vunpack.c.l.b16 %v302
        %v727 = vunpack.c.h.b16 %v302
        %v728 = vunpack.c.l.b16 %v303
        %v729 = vunpack.c.h.b16 %v303
        %v730 = vunpack.c.l.b16 %v304
        %v731 = vunpack.c.h.b16 %v304
        %v732 = vunpack.c.l.b16 %v305
        %v733 = vunpack.c.h.b16 %v305
        %v734 = vunpack.c.l.b16 %v306
        %v735 = vunpack.c.h.b16 %v306
        %v736 = vunpack.c.l.b16 %v307
        %v737 = vunpack.c.h.b16 %v307
        %v738 = vunpack.c.l.b16 %v308
        %v739 = vunpack.c.h.b16 %v308
        %v740 = vunpack.c.l.b16 %v309
        %v741 = vunpack.c.h.b16 %v309
        %v742 = vunpack.c.l.b16 %v310
        %v743 = vunpack.c.h.b16 %v310
        %v744 = vunpack.c.l.b16 %v311
        %v745 = vunpack.c.h.b16 %v311
        %v746 = vunpack.c.l.b16 %v312
        %v747 = vunpack.c.h.b16 %v312
        %v748 = vunpack.c.l.b16 %v313
        %v749 = vunpack.c.h.b16 %v313
        %v750 = vunpack.c.l.b16 %v314
        %v751 = vunpack.c.h.b16 %v314
        %v752 = vunpack.c.l.b16 %v315
        %v753 = vunpack.c.h.b16 %v315
        %v754 = vunpack.c.l.b16 %v316
        %v755 = vunpack.c.h.b16 %v316
        %v756 = vunpack.c.l.b16 %v317
        %v757 = vunpack.c.h.b16 %v317
        %v758 = vunpack.c.l.b16 %v318
        %v759 = vunpack.c.h.b16 %v318
        %v760 = vunpack.c.l.b16 %v319
        %v761 = vunpack.c.h.b16 %v319
        %v762 = vunpack.c.l.b16 %v320
        %v763 = vunpack.c.h.b16 %v320
        %v764 = vunpack.c.l.b16 %v321
        %v765 = vunpack.c.h.b16 %v321
        %v766 = vunpack.c.l.b16 %v322
        %v767 = vunpack.c.h.b16 %v322
        %v768 = vunpack.c.l.b16 %v323
        %v769 = vunpack.c.h.b16 %v323
        %v770 = vunpack.c.l.b16 %v324
        %v771 = vunpack.c.h.b16 %v324
        %v772 = vunpack.c.l.b16 %v325
        %v773 = vunpack.c.h.b16 %v325
        %v774 = vpack.c.b16 %v588, %v582
        %v775 = vpack.c.b16 %v589, %v583
        %v776 = vpack.c.b16 %v590, %v584
        %v777 = vpack.c.b16 %v591, %v585
        %v778 = vpack.c.b16 %v592, %v586
        %v779 = vpack.c.b16 %v593, %v587
        %v780 = vpack.c.b16 %v600, %v594
        %v781 = vpack.c.b16 %v601, %v595
        %v782 = vpack.c.b16 %v602, %v596
        %v783 = vpack.c.b16 %v603, %v597
        %v784 = vpack.c.b16 %v604, %v598
        %v785 = vpack.c.b16 %v605, %v599
        %v786 = vpack.c.b16 %v612, %v606
        %v787 = vpack.c.b16 %v613, %v607
        %v788 = vpack.c.b16 %v614, %v608
        %v789 = vpack.c.b16 %v615, %v609
        %v790 = vpack.c.b16 %v616, %v610
        %v791 = vpack.c.b16 %v617, %v611
        %v792 = vpack.c.b16 %v624, %v618
        %v793 = vpack.c.b16 %v625, %v619
        %v794 = vpack.c.b16 %v626, %v620
        %v795 = vpack.c.b16 %v627, %v621
        %v796 = vpack.c.b16 %v628, %v622
        %v797 = vpack.c.b16 %v629, %v623
        %v798 = vpack.c.b16 %v636, %v630
        %v799 = vpack.c.b16 %v637, %v631
        %v800 = vpack.c.b16 %v638, %v632
        %v801 = vpack.c.b16 %v639, %v633
        %v802 = vpack.c.b16 %v640, %v634
        %v803 = vpack.c.b16 %v641, %v635
        %v804 = vpack.c.b16 %v648, %v642
        %v805 = vpack.c.b16 %v649, %v643
        %v806 = vpack.c.b16 %v650, %v644
        %v807 = vpack.c.b16 %v651, %v645
        %v808 = vpack.c.b16 %v652, %v646
        %v809 = vpack.c.b16 %v653, %v647
        %v810 = vpack.c.b16 %v660, %v654
        %v811 = vpack.c.b16 %v661, %v655
        %v812 = vpack.c.b16 %v662, %v656
        %v813 = vpack.c.b16 %v663, %v657
        %v814 = vpack.c.b16 %v664, %v658
        %v815 = vpack.c.b16 %v665, %v659
        %v816 = vpack.c.b16 %v672, %v666
        %v817 = vpack.c.b16 %v673, %v667
        %v818 = vpack.c.b16 %v674, %v668
        %v819 = vpack.c.b16 %v675, %v669
        %v820 = vpack.c.b16 %v676, %v670
        %v821 = vpack.c.b16 %v677, %v671
        %v822 = vpack.c.b16 %v684, %v678
        %v823 = vpack.c.b16 %v685, %v679
        %v824 = vpack.c.b16 %v686, %v680
        %v825 = vpack.c.b16 %v687, %v681
        %v826 = vpack.c.b16 %v688, %v682
        %v827 = vpack.c.b16 %v689, %v683
        %v828 = vpack.c.b16 %v696, %v690
        %v829 = vpack.c.b16 %v697, %v691
        %v830 = vpack.c.b16 %v698, %v692
        %v831 = vpack.c.b16 %v699, %v693
        %v832 = vpack.c.b16 %v700, %v694
        %v833 = vpack.c.b16 %v701, %v695
        %v834 = vpack.c.b16 %v708, %v702
        %v835 = vpack.c.b16 %v709, %v703
        %v836 = vpack.c.b16 %v710, %v704
        %v837 = vpack.c.b16 %v711, %v705
        %v838 = vpack.c.b16 %v712, %v706
        %v839 = vpack.c.b16 %v713, %v707
        %v840 = vpack.c.b16 %v720, %v714
        %v841 = vpack.c.b16 %v721, %v715
        %v842 = vpack.c.b16 %v722, %v716
        %v843 = vpack.c.b16 %v723, %v717
        %v844 = vpack.c.b16 %v724, %v718
        %v845 = vpack.c.b16 %v725, %v719
        %v846 = vpack.c.b16 %v732, %v726
        %v847 = vpack.c.b16 %v733, %v727
        %v848 = vpack.c.b16 %v734, %v728
        %v849 = vpack.c.b16 %v735, %v729
        %v850 = vpack.c.b16 %v736, %v730
        %v851 = vpack.c.b16 %v737, %v731
        %v852 = vpack.c.b16 %v744, %v738
        %v853 = vpack.c.b16 %v745, %v739
        %v854 = vpack.c.b16 %v746, %v740
        %v855 = vpack.c.b16 %v747, %v741
        %v856 = vpack.c.b16 %v748, %v742
        %v857 = vpack.c.b16 %v749, %v743
        %v858 = vpack.c.b16 %v756, %v750
        %v859 = vpack.c.b16 %v757, %v751
        %v860 = vpack.c.b16 %v758, %v752
        %v861 = vpack.c.b16 %v759, %v753
        %v862 = vpack.c.b16 %v760, %v754
        %v863 = vpack.c.b16 %v761, %v755
        %v864 = vpack.c.b16 %v768, %v762
        %v865 = vpack.c.b16 %v769, %v763
        %v866 = vpack.c.b16 %v770, %v764
        %v867 = vpack.c.b16 %v771, %v765
        %v868 = vpack.c.b16 %v772, %v766
        %v869 = vpack.c.b16 %v773, %v767
        %966 = vmatprep.subr.bf16.mxu0 %v775
        %967 = vmatpush1.bf16.msra.mxu0 %v774
        %968 = vmatprep.subr.bf16.mxu0 %v781
        %969 = vmatpush1.bf16.msra.mxu0 %v780
        %970 = vmatprep.subr.bf16.mxu0 %v787
        %971 = vmatpush1.bf16.msra.mxu0 %v786
        %972 = vmatprep.subr.bf16.mxu0 %v793
        %973 = vmatpush1.bf16.msra.mxu0 %v792
        %974 = vmatprep.subr.bf16.mxu0 %v799
        %975 = vmatpush1.bf16.msra.mxu0 %v798
        %976 = vmatprep.subr.bf16.mxu0 %v805
        %977 = vmatpush1.bf16.msra.mxu0 %v804
        %978 = vmatprep.subr.bf16.mxu0 %v811
        %979 = vmatpush1.bf16.msra.mxu0 %v810
        %980 = vmatprep.subr.bf16.mxu0 %v817
        %981 = vmatpush1.bf16.msra.mxu0 %v816
        %982 = vmatprep.subr.bf16.mxu0 %v823
        %983 = vmatpush1.bf16.msra.mxu0 %v822
        %984 = vmatprep.subr.bf16.mxu0 %v829
        %985 = vmatpush1.bf16.msra.mxu0 %v828
        %986 = vmatprep.subr.bf16.mxu0 %v835
        %987 = vmatpush1.bf16.msra.mxu0 %v834
        %988 = vmatprep.subr.bf16.mxu0 %v841
        %989 = vmatpush1.bf16.msra.mxu0 %v840
        %990 = vmatprep.subr.bf16.mxu0 %v847
        %991 = vmatpush1.bf16.msra.mxu0 %v846
        %992 = vmatprep.subr.bf16.mxu0 %v853
        %993 = vmatpush1.bf16.msra.mxu0 %v852
        %994 = vmatprep.subr.bf16.mxu0 %v859
        %995 = vmatpush1.bf16.msra.mxu0 %v858
        %996 = vmatprep.subr.bf16.mxu0 %v865
        %997 = vmatpush1.bf16.msra.mxu0 %v864
        %998 = vmatprep.mubr.bf16.mxu0 %v423
        %999 = vmatmul.mubr.bf16.gmra.mrb[0].mxu0 %v422
        %v1000 = vpop.f32.mrb[0].mxu0
        %v1001 = vadd.f32 0.0, %v1000
        %v1002 = vpop.f32.mrb[0].mxu0
        %v1003 = vadd.f32 0.0, %v1002
        %v1004 = vpop.f32.mrb[0].mxu0
        %v1005 = vadd.f32 0.0, %v1004
        %v1006 = vpop.f32.mrb[0].mxu0
        %v1007 = vadd.f32 0.0, %v1006
        %1008 = vmatprep.mubr.bf16.mxu0 %v425
        %1009 = vmatmul.mubr.bf16.gmra.mrb[0].mxu0 %v424
        %v1010 = vpop.f32.mrb[0].mxu0
        %v1011 = vadd.f32 0.0, %v1010
        %v1012 = vpop.f32.mrb[0].mxu0
        %v1013 = vadd.f32 0.0, %v1012
        %v1014 = vpop.f32.mrb[0].mxu0
        %v1015 = vadd.f32 0.0, %v1014
        %v1016 = vpop.f32.mrb[0].mxu0
        %v1017 = vadd.f32 0.0, %v1016
        %1018 = vmatprep.mubr.bf16.mxu0 %v427
        %1019 = vmatmul.mubr.bf16.gmra.mrb[0].mxu0 %v426
        %v1020 = vpop.f32.mrb[0].mxu0
        %v1021 = vadd.f32 0.0, %v1020
        %v1022 = vpop.f32.mrb[0].mxu0
        %v1023 = vadd.f32 0.0, %v1022
        %v1024 = vpop.f32.mrb[0].mxu0
        %v1025 = vadd.f32 0.0, %v1024
        %v1026 = vpop.f32.mrb[0].mxu0
        %v1027 = vadd.f32 0.0, %v1026
        %1028 = vmatprep.mubr.bf16.mxu0 %v429
        %1029 = vmatmul.mubr.bf16.gmra.mrb[0].mxu0 %v428
        %v1030 = vpop.f32.mrb[0].mxu0
        %v1031 = vadd.f32 0.0, %v1030
        %v1032 = vpop.f32.mrb[0].mxu0
        %v1033 = vadd.f32 0.0, %v1032
        %v1034 = vpop.f32.mrb[0].mxu0
        %v1035 = vadd.f32 0.0, %v1034
        %v1036 = vpop.f32.mrb[0].mxu0
        %v1037 = vadd.f32 0.0, %v1036
        %1038 = vmatprep.mubr.bf16.mxu0 %v431
        %1039 = vmatmul.mubr.bf16.gmra.mrb[0].mxu0 %v430
        %v1040 = vpop.f32.mrb[0].mxu0
        %v1041 = vadd.f32 0.0, %v1040
        %v1042 = vpop.f32.mrb[0].mxu0
        %v1043 = vadd.f32 0.0, %v1042
        %v1044 = vpop.f32.mrb[0].mxu0
        %v1045 = vadd.f32 0.0, %v1044
        %v1046 = vpop.f32.mrb[0].mxu0
        %v1047 = vadd.f32 0.0, %v1046
        %1048 = vmatprep.mubr.bf16.mxu0 %v433
        %1049 = vmatmul.mubr.bf16.gmra.mrb[0].mxu0 %v432
        %v1050 = vpop.f32.mrb[0].mxu0
        %v1051 = vadd.f32 0.0, %v1050
        %v1052 = vpop.f32.mrb[0].mxu0
        %v1053 = vadd.f32 0.0, %v1052
        %v1054 = vpop.f32.mrb[0].mxu0
        %v1055 = vadd.f32 0.0, %v1054
        %v1056 = vpop.f32.mrb[0].mxu0
        %v1057 = vadd.f32 0.0, %v1056
        %1058 = vmatprep.mubr.bf16.mxu0 %v435
        %1059 = vmatmul.mubr.bf16.gmra.mrb[0].mxu0 %v434
        %v1060 = vpop.f32.mrb[0].mxu0
        %v1061 = vadd.f32 0.0, %v1060
        %v1062 = vpop.f32.mrb[0].mxu0
        %v1063 = vadd.f32 0.0, %v1062
        %v1064 = vpop.f32.mrb[0].mxu0
        %v1065 = vadd.f32 0.0, %v1064
        %v1066 = vpop.f32.mrb[0].mxu0
        %v1067 = vadd.f32 0.0, %v1066
        %1068 = vmatprep.mubr.bf16.mxu0 %v437
        %1069 = vmatmul.mubr.bf16.gmra.mrb[0].mxu0 %v436
        %v1070 = vpop.f32.mrb[0].mxu0
        %v1071 = vadd.f32 0.0, %v1070
        %v1072 = vpop.f32.mrb[0].mxu0
        %v1073 = vadd.f32 0.0, %v1072
        %v1074 = vpop.f32.mrb[0].mxu0
        %v1075 = vadd.f32 0.0, %v1074
        %v1076 = vpop.f32.mrb[0].mxu0
        %v1077 = vadd.f32 0.0, %v1076
        %1078 = vmatprep.mubr.bf16.mxu0 %v439
        %1079 = vmatmul.mubr.bf16.gmra.mrb[0].mxu0 %v438
        %v1080 = vpop.f32.mrb[0].mxu0
        %v1081 = vadd.f32 0.0, %v1080
        %v1082 = vpop.f32.mrb[0].mxu0
        %v1083 = vadd.f32 0.0, %v1082
        %v1084 = vpop.f32.mrb[0].mxu0
        %v1085 = vadd.f32 0.0, %v1084
        %v1086 = vpop.f32.mrb[0].mxu0
        %v1087 = vadd.f32 0.0, %v1086
        %1088 = vmatprep.mubr.bf16.mxu0 %v441
        %1089 = vmatmul.mubr.bf16.gmra.mrb[0].mxu0 %v440
        %v1090 = vpop.f32.mrb[0].mxu0
        %v1091 = vadd.f32 0.0, %v1090
        %v1092 = vpop.f32.mrb[0].mxu0
        %v1093 = vadd.f32 0.0, %v1092
        %v1094 = vpop.f32.mrb[0].mxu0
        %v1095 = vadd.f32 0.0, %v1094
        %v1096 = vpop.f32.mrb[0].mxu0
        %v1097 = vadd.f32 0.0, %v1096
        %1098 = vmatprep.mubr.bf16.mxu0 %v443
        %1099 = vmatmul.mubr.bf16.gmra.mrb[0].mxu0 %v442
        %v1100 = vpop.f32.mrb[0].mxu0
        %v1101 = vadd.f32 0.0, %v1100
        %v1102 = vpop.f32.mrb[0].mxu0
        %v1103 = vadd.f32 0.0, %v1102
        %v1104 = vpop.f32.mrb[0].mxu0
        %v1105 = vadd.f32 0.0, %v1104
        %v1106 = vpop.f32.mrb[0].mxu0
        %v1107 = vadd.f32 0.0, %v1106
        %1108 = vmatprep.mubr.bf16.mxu0 %v445
        %1109 = vmatmul.mubr.bf16.gmra.mrb[0].mxu0 %v444
        %v1110 = vpop.f32.mrb[0].mxu0
        %v1111 = vadd.f32 0.0, %v1110
        %v1112 = vpop.f32.mrb[0].mxu0
        %v1113 = vadd.f32 0.0, %v1112
        %v1114 = vpop.f32.mrb[0].mxu0
        %v1115 = vadd.f32 0.0, %v1114
        %v1116 = vpop.f32.mrb[0].mxu0
        %v1117 = vadd.f32 0.0, %v1116
        %1118 = vmatprep.mubr.bf16.mxu0 %v447
        %1119 = vmatmul.mubr.bf16.gmra.mrb[0].mxu0 %v446
        %v1120 = vpop.f32.mrb[0].mxu0
        %v1121 = vadd.f32 0.0, %v1120
        %v1122 = vpop.f32.mrb[0].mxu0
        %v1123 = vadd.f32 0.0, %v1122
        %v1124 = vpop.f32.mrb[0].mxu0
        %v1125 = vadd.f32 0.0, %v1124
        %v1126 = vpop.f32.mrb[0].mxu0
        %v1127 = vadd.f32 0.0, %v1126
        %1128 = vmatprep.mubr.bf16.mxu0 %v449
        %1129 = vmatmul.mubr.bf16.gmra.mrb[0].mxu0 %v448
        %v1130 = vpop.f32.mrb[0].mxu0
        %v1131 = vadd.f32 0.0, %v1130
        %v1132 = vpop.f32.mrb[0].mxu0
        %v1133 = vadd.f32 0.0, %v1132
        %v1134 = vpop.f32.mrb[0].mxu0
        %v1135 = vadd.f32 0.0, %v1134
        %v1136 = vpop.f32.mrb[0].mxu0
        %v1137 = vadd.f32 0.0, %v1136
        %1138 = vmatprep.mubr.bf16.mxu0 %v451
        %1139 = vmatmul.mubr.bf16.gmra.mrb[0].mxu0 %v450
        %v1140 = vpop.f32.mrb[0].mxu0
        %v1141 = vadd.f32 0.0, %v1140
        %v1142 = vpop.f32.mrb[0].mxu0
        %v1143 = vadd.f32 0.0, %v1142
        %v1144 = vpop.f32.mrb[0].mxu0
        %v1145 = vadd.f32 0.0, %v1144
        %v1146 = vpop.f32.mrb[0].mxu0
        %v1147 = vadd.f32 0.0, %v1146
        %1148 = vmatprep.mubr.bf16.mxu0 %v453
        %1149 = vmatmul.mubr.bf16.gmra.mrb[0].mxu0 %v452
        %v1150 = vpop.f32.mrb[0].mxu0
        %v1151 = vadd.f32 0.0, %v1150
        %v1152 = vpop.f32.mrb[0].mxu0
        %v1153 = vadd.f32 0.0, %v1152
        %v1154 = vpop.f32.mrb[0].mxu0
        %v1155 = vadd.f32 0.0, %v1154
        %v1156 = vpop.f32.mrb[0].mxu0
        %v1157 = vadd.f32 0.0, %v1156
        %1158 = vdwg.mxu0
        %1159 = vmatprep.subr.bf16.mxu0 %v777
        %1160 = vmatpush1.bf16.msra.mxu0 %v776
        %1161 = vmatprep.subr.bf16.mxu0 %v783
        %1162 = vmatpush1.bf16.msra.mxu0 %v782
        %1163 = vmatprep.subr.bf16.mxu0 %v789
        %1164 = vmatpush1.bf16.msra.mxu0 %v788
        %1165 = vmatprep.subr.bf16.mxu0 %v795
        %1166 = vmatpush1.bf16.msra.mxu0 %v794
        %1167 = vmatprep.subr.bf16.mxu0 %v801
        %1168 = vmatpush1.bf16.msra.mxu0 %v800
        %1169 = vmatprep.subr.bf16.mxu0 %v807
        %1170 = vmatpush1.bf16.msra.mxu0 %v806
        %1171 = vmatprep.subr.bf16.mxu0 %v813
        %1172 = vmatpush1.bf16.msra.mxu0 %v812
        %1173 = vmatprep.subr.bf16.mxu0 %v819
        %1174 = vmatpush1.bf16.msra.mxu0 %v818
        %1175 = vmatprep.subr.bf16.mxu0 %v825
        %1176 = vmatpush1.bf16.msra.mxu0 %v824
        %1177 = vmatprep.subr.bf16.mxu0 %v831
        %1178 = vmatpush1.bf16.msra.mxu0 %v830
        %1179 = vmatprep.subr.bf16.mxu0 %v837
        %1180 = vmatpush1.bf16.msra.mxu0 %v836
        %1181 = vmatprep.subr.bf16.mxu0 %v843
        %1182 = vmatpush1.bf16.msra.mxu0 %v842
        %1183 = vmatprep.subr.bf16.mxu0 %v849
        %1184 = vmatpush1.bf16.msra.mxu0 %v848
        %1185 = vmatprep.subr.bf16.mxu0 %v855
        %1186 = vmatpush1.bf16.msra.mxu0 %v854
        %1187 = vmatprep.subr.bf16.mxu0 %v861
        %1188 = vmatpush1.bf16.msra.mxu0 %v860
        %1189 = vmatprep.subr.bf16.mxu0 %v867
        %1190 = vmatpush1.bf16.msra.mxu0 %v866
        %1191 = vmatprep.mubr.bf16.mxu0 %v423
        %1192 = vmatmul.mubr.bf16.gmra.mrb[0].mxu0 %v422
        %v1193 = vpop.f32.mrb[0].mxu0
        %v1194 = vadd.f32 0.0, %v1193
        %v1195 = vpop.f32.mrb[0].mxu0
        %v1196 = vadd.f32 0.0, %v1195
        %v1197 = vpop.f32.mrb[0].mxu0
        %v1198 = vadd.f32 0.0, %v1197
        %v1199 = vpop.f32.mrb[0].mxu0
        %v1200 = vadd.f32 0.0, %v1199
        %1201 = vmatprep.mubr.bf16.mxu0 %v425
        %1202 = vmatmul.mubr.bf16.gmra.mrb[0].mxu0 %v424
        %v1203 = vpop.f32.mrb[0].mxu0
        %v1204 = vadd.f32 0.0, %v1203
        %v1205 = vpop.f32.mrb[0].mxu0
        %v1206 = vadd.f32 0.0, %v1205
        %v1207 = vpop.f32.mrb[0].mxu0
        %v1208 = vadd.f32 0.0, %v1207
        %v1209 = vpop.f32.mrb[0].mxu0
        %v1210 = vadd.f32 0.0, %v1209
        %1211 = vmatprep.mubr.bf16.mxu0 %v427
        %1212 = vmatmul.mubr.bf16.gmra.mrb[0].mxu0 %v426
        %v1213 = vpop.f32.mrb[0].mxu0
        %v1214 = vadd.f32 0.0, %v1213
        %v1215 = vpop.f32.mrb[0].mxu0
        %v1216 = vadd.f32 0.0, %v1215
        %v1217 = vpop.f32.mrb[0].mxu0
        %v1218 = vadd.f32 0.0, %v1217
        %v1219 = vpop.f32.mrb[0].mxu0
        %v1220 = vadd.f32 0.0, %v1219
        %1221 = vmatprep.mubr.bf16.mxu0 %v429
        %1222 = vmatmul.mubr.bf16.gmra.mrb[0].mxu0 %v428
        %v1223 = vpop.f32.mrb[0].mxu0
        %v1224 = vadd.f32 0.0, %v1223
        %v1225 = vpop.f32.mrb[0].mxu0
        %v1226 = vadd.f32 0.0, %v1225
        %v1227 = vpop.f32.mrb[0].mxu0
        %v1228 = vadd.f32 0.0, %v1227
        %v1229 = vpop.f32.mrb[0].mxu0
        %v1230 = vadd.f32 0.0, %v1229
        %1231 = vmatprep.mubr.bf16.mxu0 %v431
        %1232 = vmatmul.mubr.bf16.gmra.mrb[0].mxu0 %v430
        %v1233 = vpop.f32.mrb[0].mxu0
        %v1234 = vadd.f32 0.0, %v1233
        %v1235 = vpop.f32.mrb[0].mxu0
        %v1236 = vadd.f32 0.0, %v1235
        %v1237 = vpop.f32.mrb[0].mxu0
        %v1238 = vadd.f32 0.0, %v1237
        %v1239 = vpop.f32.mrb[0].mxu0
        %v1240 = vadd.f32 0.0, %v1239
        %1241 = vmatprep.mubr.bf16.mxu0 %v433
        %1242 = vmatmul.mubr.bf16.gmra.mrb[0].mxu0 %v432
        %v1243 = vpop.f32.mrb[0].mxu0
        %v1244 = vadd.f32 0.0, %v1243
        %v1245 = vpop.f32.mrb[0].mxu0
        %v1246 = vadd.f32 0.0, %v1245
        %v1247 = vpop.f32.mrb[0].mxu0
        %v1248 = vadd.f32 0.0, %v1247
        %v1249 = vpop.f32.mrb[0].mxu0
        %v1250 = vadd.f32 0.0, %v1249
        %1251 = vmatprep.mubr.bf16.mxu0 %v435
        %1252 = vmatmul.mubr.bf16.gmra.mrb[0].mxu0 %v434
        %v1253 = vpop.f32.mrb[0].mxu0
        %v1254 = vadd.f32 0.0, %v1253
        %v1255 = vpop.f32.mrb[0].mxu0
        %v1256 = vadd.f32 0.0, %v1255
        %v1257 = vpop.f32.mrb[0].mxu0
        %v1258 = vadd.f32 0.0, %v1257
        %v1259 = vpop.f32.mrb[0].mxu0
        %v1260 = vadd.f32 0.0, %v1259
        %1261 = vmatprep.mubr.bf16.mxu0 %v437
        %1262 = vmatmul.mubr.bf16.gmra.mrb[0].mxu0 %v436
        %v1263 = vpop.f32.mrb[0].mxu0
        %v1264 = vadd.f32 0.0, %v1263
        %v1265 = vpop.f32.mrb[0].mxu0
        %v1266 = vadd.f32 0.0, %v1265
        %v1267 = vpop.f32.mrb[0].mxu0
        %v1268 = vadd.f32 0.0, %v1267
        %v1269 = vpop.f32.mrb[0].mxu0
        %v1270 = vadd.f32 0.0, %v1269
        %1271 = vmatprep.mubr.bf16.mxu0 %v439
        %1272 = vmatmul.mubr.bf16.gmra.mrb[0].mxu0 %v438
        %v1273 = vpop.f32.mrb[0].mxu0
        %v1274 = vadd.f32 0.0, %v1273
        %v1275 = vpop.f32.mrb[0].mxu0
        %v1276 = vadd.f32 0.0, %v1275
        %v1277 = vpop.f32.mrb[0].mxu0
        %v1278 = vadd.f32 0.0, %v1277
        %v1279 = vpop.f32.mrb[0].mxu0
        %v1280 = vadd.f32 0.0, %v1279
        %1281 = vmatprep.mubr.bf16.mxu0 %v441
        %1282 = vmatmul.mubr.bf16.gmra.mrb[0].mxu0 %v440
        %v1283 = vpop.f32.mrb[0].mxu0
        %v1284 = vadd.f32 0.0, %v1283
        %v1285 = vpop.f32.mrb[0].mxu0
        %v1286 = vadd.f32 0.0, %v1285
        %v1287 = vpop.f32.mrb[0].mxu0
        %v1288 = vadd.f32 0.0, %v1287
        %v1289 = vpop.f32.mrb[0].mxu0
        %v1290 = vadd.f32 0.0, %v1289
        %1291 = vmatprep.mubr.bf16.mxu0 %v443
        %1292 = vmatmul.mubr.bf16.gmra.mrb[0].mxu0 %v442
        %v1293 = vpop.f32.mrb[0].mxu0
        %v1294 = vadd.f32 0.0, %v1293
        %v1295 = vpop.f32.mrb[0].mxu0
        %v1296 = vadd.f32 0.0, %v1295
        %v1297 = vpop.f32.mrb[0].mxu0
        %v1298 = vadd.f32 0.0, %v1297
        %v1299 = vpop.f32.mrb[0].mxu0
        %v1300 = vadd.f32 0.0, %v1299
        %1301 = vmatprep.mubr.bf16.mxu0 %v445
        %1302 = vmatmul.mubr.bf16.gmra.mrb[0].mxu0 %v444
        %v1303 = vpop.f32.mrb[0].mxu0
        %v1304 = vadd.f32 0.0, %v1303
        %v1305 = vpop.f32.mrb[0].mxu0
        %v1306 = vadd.f32 0.0, %v1305
        %v1307 = vpop.f32.mrb[0].mxu0
        %v1308 = vadd.f32 0.0, %v1307
        %v1309 = vpop.f32.mrb[0].mxu0
        %v1310 = vadd.f32 0.0, %v1309
        %1311 = vmatprep.mubr.bf16.mxu0 %v447
        %1312 = vmatmul.mubr.bf16.gmra.mrb[0].mxu0 %v446
        %v1313 = vpop.f32.mrb[0].mxu0
        %v1314 = vadd.f32 0.0, %v1313
        %v1315 = vpop.f32.mrb[0].mxu0
        %v1316 = vadd.f32 0.0, %v1315
        %v1317 = vpop.f32.mrb[0].mxu0
        %v1318 = vadd.f32 0.0, %v1317
        %v1319 = vpop.f32.mrb[0].mxu0
        %v1320 = vadd.f32 0.0, %v1319
        %1321 = vmatprep.mubr.bf16.mxu0 %v449
        %1322 = vmatmul.mubr.bf16.gmra.mrb[0].mxu0 %v448
        %v1323 = vpop.f32.mrb[0].mxu0
        %v1324 = vadd.f32 0.0, %v1323
        %v1325 = vpop.f32.mrb[0].mxu0
        %v1326 = vadd.f32 0.0, %v1325
        %v1327 = vpop.f32.mrb[0].mxu0
        %v1328 = vadd.f32 0.0, %v1327
        %v1329 = vpop.f32.mrb[0].mxu0
        %v1330 = vadd.f32 0.0, %v1329
        %1331 = vmatprep.mubr.bf16.mxu0 %v451
        %1332 = vmatmul.mubr.bf16.gmra.mrb[0].mxu0 %v450
        %v1333 = vpop.f32.mrb[0].mxu0
        %v1334 = vadd.f32 0.0, %v1333
        %v1335 = vpop.f32.mrb[0].mxu0
        %v1336 = vadd.f32 0.0, %v1335
        %v1337 = vpop.f32.mrb[0].mxu0
        %v1338 = vadd.f32 0.0, %v1337
        %v1339 = vpop.f32.mrb[0].mxu0
        %v1340 = vadd.f32 0.0, %v1339
        %1341 = vmatprep.mubr.bf16.mxu0 %v453
        %1342 = vmatmul.mubr.bf16.gmra.mrb[0].mxu0 %v452
        %v1343 = vpop.f32.mrb[0].mxu0
        %v1344 = vadd.f32 0.0, %v1343
        %v1345 = vpop.f32.mrb[0].mxu0
        %v1346 = vadd.f32 0.0, %v1345
        %v1347 = vpop.f32.mrb[0].mxu0
        %v1348 = vadd.f32 0.0, %v1347
        %v1349 = vpop.f32.mrb[0].mxu0
        %v1350 = vadd.f32 0.0, %v1349
        %1351 = vdwg.mxu0
        %1352 = vmatprep.subr.bf16.mxu0 %v779
        %1353 = vmatpush1.bf16.msra.mxu0 %v778
        %1354 = vmatprep.subr.bf16.mxu0 %v785
        %1355 = vmatpush1.bf16.msra.mxu0 %v784
        %1356 = vmatprep.subr.bf16.mxu0 %v791
        %1357 = vmatpush1.bf16.msra.mxu0 %v790
        %1358 = vmatprep.subr.bf16.mxu0 %v797
        %1359 = vmatpush1.bf16.msra.mxu0 %v796
        %1360 = vmatprep.subr.bf16.mxu0 %v803
        %1361 = vmatpush1.bf16.msra.mxu0 %v802
        %1362 = vmatprep.subr.bf16.mxu0 %v809
        %1363 = vmatpush1.bf16.msra.mxu0 %v808
        %1364 = vmatprep.subr.bf16.mxu0 %v815
        %1365 = vmatpush1.bf16.msra.mxu0 %v814
        %1366 = vmatprep.subr.bf16.mxu0 %v821
        %1367 = vmatpush1.bf16.msra.mxu0 %v820
        %1368 = vmatprep.subr.bf16.mxu0 %v827
        %1369 = vmatpush1.bf16.msra.mxu0 %v826
        %1370 = vmatprep.subr.bf16.mxu0 %v833
        %1371 = vmatpush1.bf16.msra.mxu0 %v832
        %1372 = vmatprep.subr.bf16.mxu0 %v839
        %1373 = vmatpush1.bf16.msra.mxu0 %v838
        %1374 = vmatprep.subr.bf16.mxu0 %v845
        %1375 = vmatpush1.bf16.msra.mxu0 %v844
        %1376 = vmatprep.subr.bf16.mxu0 %v851
        %1377 = vmatpush1.bf16.msra.mxu0 %v850
        %1378 = vmatprep.subr.bf16.mxu0 %v857
        %1379 = vmatpush1.bf16.msra.mxu0 %v856
        %1380 = vmatprep.subr.bf16.mxu0 %v863
        %1381 = vmatpush1.bf16.msra.mxu0 %v862
        %1382 = vmatprep.subr.bf16.mxu0 %v869
        %1383 = vmatpush1.bf16.msra.mxu0 %v868
        %1384 = vmatprep.mubr.bf16.mxu0 %v423
        %1385 = vmatmul.mubr.bf16.gmra.mrb[0].mxu0 %v422
        %v1386 = vpop.f32.mrb[0].mxu0
        %v1387 = vadd.f32 0.0, %v1386
        %v1388 = vpop.f32.mrb[0].mxu0
        %v1389 = vadd.f32 0.0, %v1388
        %v1390 = vpop.f32.mrb[0].mxu0
        %v1391 = vadd.f32 0.0, %v1390
        %v1392 = vpop.f32.mrb[0].mxu0
        %v1393 = vadd.f32 0.0, %v1392
        %1394 = vmatprep.mubr.bf16.mxu0 %v425
        %1395 = vmatmul.mubr.bf16.gmra.mrb[0].mxu0 %v424
        %v1396 = vpop.f32.mrb[0].mxu0
        %v1397 = vadd.f32 0.0, %v1396
        %v1398 = vpop.f32.mrb[0].mxu0
        %v1399 = vadd.f32 0.0, %v1398
        %v1400 = vpop.f32.mrb[0].mxu0
        %v1401 = vadd.f32 0.0, %v1400
        %v1402 = vpop.f32.mrb[0].mxu0
        %v1403 = vadd.f32 0.0, %v1402
        %1404 = vmatprep.mubr.bf16.mxu0 %v427
        %1405 = vmatmul.mubr.bf16.gmra.mrb[0].mxu0 %v426
        %v1406 = vpop.f32.mrb[0].mxu0
        %v1407 = vadd.f32 0.0, %v1406
        %v1408 = vpop.f32.mrb[0].mxu0
        %v1409 = vadd.f32 0.0, %v1408
        %v1410 = vpop.f32.mrb[0].mxu0
        %v1411 = vadd.f32 0.0, %v1410
        %v1412 = vpop.f32.mrb[0].mxu0
        %v1413 = vadd.f32 0.0, %v1412
        %1414 = vmatprep.mubr.bf16.mxu0 %v429
        %1415 = vmatmul.mubr.bf16.gmra.mrb[0].mxu0 %v428
        %v1416 = vpop.f32.mrb[0].mxu0
        %v1417 = vadd.f32 0.0, %v1416
        %v1418 = vpop.f32.mrb[0].mxu0
        %v1419 = vadd.f32 0.0, %v1418
        %v1420 = vpop.f32.mrb[0].mxu0
        %v1421 = vadd.f32 0.0, %v1420
        %v1422 = vpop.f32.mrb[0].mxu0
        %v1423 = vadd.f32 0.0, %v1422
        %1424 = vmatprep.mubr.bf16.mxu0 %v431
        %1425 = vmatmul.mubr.bf16.gmra.mrb[0].mxu0 %v430
        %v1426 = vpop.f32.mrb[0].mxu0
        %v1427 = vadd.f32 0.0, %v1426
        %v1428 = vpop.f32.mrb[0].mxu0
        %v1429 = vadd.f32 0.0, %v1428
        %v1430 = vpop.f32.mrb[0].mxu0
        %v1431 = vadd.f32 0.0, %v1430
        %v1432 = vpop.f32.mrb[0].mxu0
        %v1433 = vadd.f32 0.0, %v1432
        %1434 = vmatprep.mubr.bf16.mxu0 %v433
        %1435 = vmatmul.mubr.bf16.gmra.mrb[0].mxu0 %v432
        %v1436 = vpop.f32.mrb[0].mxu0
        %v1437 = vadd.f32 0.0, %v1436
        %v1438 = vpop.f32.mrb[0].mxu0
        %v1439 = vadd.f32 0.0, %v1438
        %v1440 = vpop.f32.mrb[0].mxu0
        %v1441 = vadd.f32 0.0, %v1440
        %v1442 = vpop.f32.mrb[0].mxu0
        %v1443 = vadd.f32 0.0, %v1442
        %1444 = vmatprep.mubr.bf16.mxu0 %v435
        %1445 = vmatmul.mubr.bf16.gmra.mrb[0].mxu0 %v434
        %v1446 = vpop.f32.mrb[0].mxu0
        %v1447 = vadd.f32 0.0, %v1446
        %v1448 = vpop.f32.mrb[0].mxu0
        %v1449 = vadd.f32 0.0, %v1448
        %v1450 = vpop.f32.mrb[0].mxu0
        %v1451 = vadd.f32 0.0, %v1450
        %v1452 = vpop.f32.mrb[0].mxu0
        %v1453 = vadd.f32 0.0, %v1452
        %1454 = vmatprep.mubr.bf16.mxu0 %v437
        %1455 = vmatmul.mubr.bf16.gmra.mrb[0].mxu0 %v436
        %v1456 = vpop.f32.mrb[0].mxu0
        %v1457 = vadd.f32 0.0, %v1456
        %v1458 = vpop.f32.mrb[0].mxu0
        %v1459 = vadd.f32 0.0, %v1458
        %v1460 = vpop.f32.mrb[0].mxu0
        %v1461 = vadd.f32 0.0, %v1460
        %v1462 = vpop.f32.mrb[0].mxu0
        %v1463 = vadd.f32 0.0, %v1462
        %1464 = vmatprep.mubr.bf16.mxu0 %v439
        %1465 = vmatmul.mubr.bf16.gmra.mrb[0].mxu0 %v438
        %v1466 = vpop.f32.mrb[0].mxu0
        %v1467 = vadd.f32 0.0, %v1466
        %v1468 = vpop.f32.mrb[0].mxu0
        %v1469 = vadd.f32 0.0, %v1468
        %v1470 = vpop.f32.mrb[0].mxu0
        %v1471 = vadd.f32 0.0, %v1470
        %v1472 = vpop.f32.mrb[0].mxu0
        %v1473 = vadd.f32 0.0, %v1472
        %1474 = vmatprep.mubr.bf16.mxu0 %v441
        %1475 = vmatmul.mubr.bf16.gmra.mrb[0].mxu0 %v440
        %v1476 = vpop.f32.mrb[0].mxu0
        %v1477 = vadd.f32 0.0, %v1476
        %v1478 = vpop.f32.mrb[0].mxu0
        %v1479 = vadd.f32 0.0, %v1478
        %v1480 = vpop.f32.mrb[0].mxu0
        %v1481 = vadd.f32 0.0, %v1480
        %v1482 = vpop.f32.mrb[0].mxu0
        %v1483 = vadd.f32 0.0, %v1482
        %1484 = vmatprep.mubr.bf16.mxu0 %v443
        %1485 = vmatmul.mubr.bf16.gmra.mrb[0].mxu0 %v442
        %v1486 = vpop.f32.mrb[0].mxu0
        %v1487 = vadd.f32 0.0, %v1486
        %v1488 = vpop.f32.mrb[0].mxu0
        %v1489 = vadd.f32 0.0, %v1488
        %v1490 = vpop.f32.mrb[0].mxu0
        %v1491 = vadd.f32 0.0, %v1490
        %v1492 = vpop.f32.mrb[0].mxu0
        %v1493 = vadd.f32 0.0, %v1492
        %1494 = vmatprep.mubr.bf16.mxu0 %v445
        %1495 = vmatmul.mubr.bf16.gmra.mrb[0].mxu0 %v444
        %v1496 = vpop.f32.mrb[0].mxu0
        %v1497 = vadd.f32 0.0, %v1496
        %v1498 = vpop.f32.mrb[0].mxu0
        %v1499 = vadd.f32 0.0, %v1498
        %v1500 = vpop.f32.mrb[0].mxu0
        %v1501 = vadd.f32 0.0, %v1500
        %v1502 = vpop.f32.mrb[0].mxu0
        %v1503 = vadd.f32 0.0, %v1502
        %1504 = vmatprep.mubr.bf16.mxu0 %v447
        %1505 = vmatmul.mubr.bf16.gmra.mrb[0].mxu0 %v446
        %v1506 = vpop.f32.mrb[0].mxu0
        %v1507 = vadd.f32 0.0, %v1506
        %v1508 = vpop.f32.mrb[0].mxu0
        %v1509 = vadd.f32 0.0, %v1508
        %v1510 = vpop.f32.mrb[0].mxu0
        %v1511 = vadd.f32 0.0, %v1510
        %v1512 = vpop.f32.mrb[0].mxu0
        %v1513 = vadd.f32 0.0, %v1512
        %1514 = vmatprep.mubr.bf16.mxu0 %v449
        %1515 = vmatmul.mubr.bf16.gmra.mrb[0].mxu0 %v448
        %v1516 = vpop.f32.mrb[0].mxu0
        %v1517 = vadd.f32 0.0, %v1516
        %v1518 = vpop.f32.mrb[0].mxu0
        %v1519 = vadd.f32 0.0, %v1518
        %v1520 = vpop.f32.mrb[0].mxu0
        %v1521 = vadd.f32 0.0, %v1520
        %v1522 = vpop.f32.mrb[0].mxu0
        %v1523 = vadd.f32 0.0, %v1522
        %1524 = vmatprep.mubr.bf16.mxu0 %v451
        %1525 = vmatmul.mubr.bf16.gmra.mrb[0].mxu0 %v450
        %v1526 = vpop.f32.mrb[0].mxu0
        %v1527 = vadd.f32 0.0, %v1526
        %v1528 = vpop.f32.mrb[0].mxu0
        %v1529 = vadd.f32 0.0, %v1528
        %v1530 = vpop.f32.mrb[0].mxu0
        %v1531 = vadd.f32 0.0, %v1530
        %v1532 = vpop.f32.mrb[0].mxu0
        %v1533 = vadd.f32 0.0, %v1532
        %1534 = vmatprep.mubr.bf16.mxu0 %v453
        %1535 = vmatmul.mubr.bf16.gmra.mrb[0].mxu0 %v452
        %v1536 = vpop.f32.mrb[0].mxu0
        %v1537 = vadd.f32 0.0, %v1536
        %v1538 = vpop.f32.mrb[0].mxu0
        %v1539 = vadd.f32 0.0, %v1538
        %v1540 = vpop.f32.mrb[0].mxu0
        %v1541 = vadd.f32 0.0, %v1540
        %v1542 = vpop.f32.mrb[0].mxu0
        %v1543 = vadd.f32 0.0, %v1542
        %1544 = vdwg.mxu0
        %v1545 = vpack.c.bf16 %v1005, %v1001
        %v1546 = vpack.c.bf16 %v1007, %v1003
        %v1547 = vpack.c.bf16 %v1198, %v1194
        %v1548 = vpack.c.bf16 %v1200, %v1196
        %v1549 = vpack.c.bf16 %v1391, %v1387
        %v1550 = vpack.c.bf16 %v1393, %v1389
        %v1551 = vpack.c.bf16 %v1015, %v1011
        %v1552 = vpack.c.bf16 %v1017, %v1013
        %v1553 = vpack.c.bf16 %v1208, %v1204
        %v1554 = vpack.c.bf16 %v1210, %v1206
        %v1555 = vpack.c.bf16 %v1401, %v1397
        %v1556 = vpack.c.bf16 %v1403, %v1399
        %v1557 = vpack.c.bf16 %v1025, %v1021
        %v1558 = vpack.c.bf16 %v1027, %v1023
        %v1559 = vpack.c.bf16 %v1218, %v1214
        %v1560 = vpack.c.bf16 %v1220, %v1216
        %v1561 = vpack.c.bf16 %v1411, %v1407
        %v1562 = vpack.c.bf16 %v1413, %v1409
        %v1563 = vpack.c.bf16 %v1035, %v1031
        %v1564 = vpack.c.bf16 %v1037, %v1033
        %v1565 = vpack.c.bf16 %v1228, %v1224
        %v1566 = vpack.c.bf16 %v1230, %v1226
        %v1567 = vpack.c.bf16 %v1421, %v1417
        %v1568 = vpack.c.bf16 %v1423, %v1419
        %v1569 = vpack.c.bf16 %v1045, %v1041
        %v1570 = vpack.c.bf16 %v1047, %v1043
        %v1571 = vpack.c.bf16 %v1238, %v1234
        %v1572 = vpack.c.bf16 %v1240, %v1236
        %v1573 = vpack.c.bf16 %v1431, %v1427
        %v1574 = vpack.c.bf16 %v1433, %v1429
        %v1575 = vpack.c.bf16 %v1055, %v1051
        %v1576 = vpack.c.bf16 %v1057, %v1053
        %v1577 = vpack.c.bf16 %v1248, %v1244
        %v1578 = vpack.c.bf16 %v1250, %v1246
        %v1579 = vpack.c.bf16 %v1441, %v1437
        %v1580 = vpack.c.bf16 %v1443, %v1439
        %v1581 = vpack.c.bf16 %v1065, %v1061
        %v1582 = vpack.c.bf16 %v1067, %v1063
        %v1583 = vpack.c.bf16 %v1258, %v1254
        %v1584 = vpack.c.bf16 %v1260, %v1256
        %v1585 = vpack.c.bf16 %v1451, %v1447
        %v1586 = vpack.c.bf16 %v1453, %v1449
        %v1587 = vpack.c.bf16 %v1075, %v1071
        %v1588 = vpack.c.bf16 %v1077, %v1073
        %v1589 = vpack.c.bf16 %v1268, %v1264
        %v1590 = vpack.c.bf16 %v1270, %v1266
        %v1591 = vpack.c.bf16 %v1461, %v1457
        %v1592 = vpack.c.bf16 %v1463, %v1459
        %v1593 = vpack.c.bf16 %v1085, %v1081
        %v1594 = vpack.c.bf16 %v1087, %v1083
        %v1595 = vpack.c.bf16 %v1278, %v1274
        %v1596 = vpack.c.bf16 %v1280, %v1276
        %v1597 = vpack.c.bf16 %v1471, %v1467
        %v1598 = vpack.c.bf16 %v1473, %v1469
        %v1599 = vpack.c.bf16 %v1095, %v1091
        %v1600 = vpack.c.bf16 %v1097, %v1093
        %v1601 = vpack.c.bf16 %v1288, %v1284
        %v1602 = vpack.c.bf16 %v1290, %v1286
        %v1603 = vpack.c.bf16 %v1481, %v1477
        %v1604 = vpack.c.bf16 %v1483, %v1479
        %v1605 = vpack.c.bf16 %v1105, %v1101
        %v1606 = vpack.c.bf16 %v1107, %v1103
        %v1607 = vpack.c.bf16 %v1298, %v1294
        %v1608 = vpack.c.bf16 %v1300, %v1296
        %v1609 = vpack.c.bf16 %v1491, %v1487
        %v1610 = vpack.c.bf16 %v1493, %v1489
        %v1611 = vpack.c.bf16 %v1115, %v1111
        %v1612 = vpack.c.bf16 %v1117, %v1113
        %v1613 = vpack.c.bf16 %v1308, %v1304
        %v1614 = vpack.c.bf16 %v1310, %v1306
        %v1615 = vpack.c.bf16 %v1501, %v1497
        %v1616 = vpack.c.bf16 %v1503, %v1499
        %v1617 = vpack.c.bf16 %v1125, %v1121
        %v1618 = vpack.c.bf16 %v1127, %v1123
        %v1619 = vpack.c.bf16 %v1318, %v1314
        %v1620 = vpack.c.bf16 %v1320, %v1316
        %v1621 = vpack.c.bf16 %v1511, %v1507
        %v1622 = vpack.c.bf16 %v1513, %v1509
        %v1623 = vpack.c.bf16 %v1135, %v1131
        %v1624 = vpack.c.bf16 %v1137, %v1133
        %v1625 = vpack.c.bf16 %v1328, %v1324
        %v1626 = vpack.c.bf16 %v1330, %v1326
        %v1627 = vpack.c.bf16 %v1521, %v1517
        %v1628 = vpack.c.bf16 %v1523, %v1519
        %v1629 = vpack.c.bf16 %v1145, %v1141
        %v1630 = vpack.c.bf16 %v1147, %v1143
        %v1631 = vpack.c.bf16 %v1338, %v1334
        %v1632 = vpack.c.bf16 %v1340, %v1336
        %v1633 = vpack.c.bf16 %v1531, %v1527
        %v1634 = vpack.c.bf16 %v1533, %v1529
        %v1635 = vpack.c.bf16 %v1155, %v1151
        %v1636 = vpack.c.bf16 %v1157, %v1153
        %v1637 = vpack.c.bf16 %v1348, %v1344
        %v1638 = vpack.c.bf16 %v1350, %v1346
        %v1639 = vpack.c.bf16 %v1541, %v1537
        %v1640 = vpack.c.bf16 %v1543, %v1539
        %v1737 = vunpack.c.l.b16 %v1545
        %v1738 = vunpack.c.l.b16 %v1546
        %v1739 = vunpack.c.l.b16 %v1547
        %v1740 = vunpack.c.l.b16 %v1548
        %v1741 = vunpack.c.l.b16 %v1549
        %v1742 = vunpack.c.l.b16 %v1550
        %v1743 = vunpack.c.h.b16 %v1545
        %v1744 = vunpack.c.h.b16 %v1546
        %v1745 = vunpack.c.h.b16 %v1547
        %v1746 = vunpack.c.h.b16 %v1548
        %v1747 = vunpack.c.h.b16 %v1549
        %v1748 = vunpack.c.h.b16 %v1550
        %v1749 = vunpack.c.l.b16 %v1551
        %v1750 = vunpack.c.l.b16 %v1552
        %v1751 = vunpack.c.l.b16 %v1553
        %v1752 = vunpack.c.l.b16 %v1554
        %v1753 = vunpack.c.l.b16 %v1555
        %v1754 = vunpack.c.l.b16 %v1556
        %v1755 = vunpack.c.h.b16 %v1551
        %v1756 = vunpack.c.h.b16 %v1552
        %v1757 = vunpack.c.h.b16 %v1553
        %v1758 = vunpack.c.h.b16 %v1554
        %v1759 = vunpack.c.h.b16 %v1555
        %v1760 = vunpack.c.h.b16 %v1556
        %v1761 = vunpack.c.l.b16 %v1557
        %v1762 = vunpack.c.l.b16 %v1558
        %v1763 = vunpack.c.l.b16 %v1559
        %v1764 = vunpack.c.l.b16 %v1560
        %v1765 = vunpack.c.l.b16 %v1561
        %v1766 = vunpack.c.l.b16 %v1562
        %v1767 = vunpack.c.h.b16 %v1557
        %v1768 = vunpack.c.h.b16 %v1558
        %v1769 = vunpack.c.h.b16 %v1559
        %v1770 = vunpack.c.h.b16 %v1560
        %v1771 = vunpack.c.h.b16 %v1561
        %v1772 = vunpack.c.h.b16 %v1562
        %v1773 = vunpack.c.l.b16 %v1563
        %v1774 = vunpack.c.l.b16 %v1564
        %v1775 = vunpack.c.l.b16 %v1565
        %v1776 = vunpack.c.l.b16 %v1566
        %v1777 = vunpack.c.l.b16 %v1567
        %v1778 = vunpack.c.l.b16 %v1568
        %v1779 = vunpack.c.h.b16 %v1563
        %v1780 = vunpack.c.h.b16 %v1564
        %v1781 = vunpack.c.h.b16 %v1565
        %v1782 = vunpack.c.h.b16 %v1566
        %v1783 = vunpack.c.h.b16 %v1567
        %v1784 = vunpack.c.h.b16 %v1568
        %v1785 = vunpack.c.l.b16 %v1569
        %v1786 = vunpack.c.l.b16 %v1570
        %v1787 = vunpack.c.l.b16 %v1571
        %v1788 = vunpack.c.l.b16 %v1572
        %v1789 = vunpack.c.l.b16 %v1573
        %v1790 = vunpack.c.l.b16 %v1574
        %v1791 = vunpack.c.h.b16 %v1569
        %v1792 = vunpack.c.h.b16 %v1570
        %v1793 = vunpack.c.h.b16 %v1571
        %v1794 = vunpack.c.h.b16 %v1572
        %v1795 = vunpack.c.h.b16 %v1573
        %v1796 = vunpack.c.h.b16 %v1574
        %v1797 = vunpack.c.l.b16 %v1575
        %v1798 = vunpack.c.l.b16 %v1576
        %v1799 = vunpack.c.l.b16 %v1577
        %v1800 = vunpack.c.l.b16 %v1578
        %v1801 = vunpack.c.l.b16 %v1579
        %v1802 = vunpack.c.l.b16 %v1580
        %v1803 = vunpack.c.h.b16 %v1575
        %v1804 = vunpack.c.h.b16 %v1576
        %v1805 = vunpack.c.h.b16 %v1577
        %v1806 = vunpack.c.h.b16 %v1578
        %v1807 = vunpack.c.h.b16 %v1579
        %v1808 = vunpack.c.h.b16 %v1580
        %v1809 = vunpack.c.l.b16 %v1581
        %v1810 = vunpack.c.l.b16 %v1582
        %v1811 = vunpack.c.l.b16 %v1583
        %v1812 = vunpack.c.l.b16 %v1584
        %v1813 = vunpack.c.l.b16 %v1585
        %v1814 = vunpack.c.l.b16 %v1586
        %v1815 = vunpack.c.h.b16 %v1581
        %v1816 = vunpack.c.h.b16 %v1582
        %v1817 = vunpack.c.h.b16 %v1583
        %v1818 = vunpack.c.h.b16 %v1584
        %v1819 = vunpack.c.h.b16 %v1585
        %v1820 = vunpack.c.h.b16 %v1586
        %v1821 = vunpack.c.l.b16 %v1587
        %v1822 = vunpack.c.l.b16 %v1588
        %v1823 = vunpack.c.l.b16 %v1589
        %v1824 = vunpack.c.l.b16 %v1590
        %v1825 = vunpack.c.l.b16 %v1591
        %v1826 = vunpack.c.l.b16 %v1592
        %v1827 = vunpack.c.h.b16 %v1587
        %v1828 = vunpack.c.h.b16 %v1588
        %v1829 = vunpack.c.h.b16 %v1589
        %v1830 = vunpack.c.h.b16 %v1590
        %v1831 = vunpack.c.h.b16 %v1591
        %v1832 = vunpack.c.h.b16 %v1592
        %v1833 = vunpack.c.l.b16 %v1593
        %v1834 = vunpack.c.l.b16 %v1594
        %v1835 = vunpack.c.l.b16 %v1595
        %v1836 = vunpack.c.l.b16 %v1596
        %v1837 = vunpack.c.l.b16 %v1597
        %v1838 = vunpack.c.l.b16 %v1598
        %v1839 = vunpack.c.h.b16 %v1593
        %v1840 = vunpack.c.h.b16 %v1594
        %v1841 = vunpack.c.h.b16 %v1595
        %v1842 = vunpack.c.h.b16 %v1596
        %v1843 = vunpack.c.h.b16 %v1597
        %v1844 = vunpack.c.h.b16 %v1598
        %v1845 = vunpack.c.l.b16 %v1599
        %v1846 = vunpack.c.l.b16 %v1600
        %v1847 = vunpack.c.l.b16 %v1601
        %v1848 = vunpack.c.l.b16 %v1602
        %v1849 = vunpack.c.l.b16 %v1603
        %v1850 = vunpack.c.l.b16 %v1604
        %v1851 = vunpack.c.h.b16 %v1599
        %v1852 = vunpack.c.h.b16 %v1600
        %v1853 = vunpack.c.h.b16 %v1601
        %v1854 = vunpack.c.h.b16 %v1602
        %v1855 = vunpack.c.h.b16 %v1603
        %v1856 = vunpack.c.h.b16 %v1604
        %v1857 = vunpack.c.l.b16 %v1605
        %v1858 = vunpack.c.l.b16 %v1606
        %v1859 = vunpack.c.l.b16 %v1607
        %v1860 = vunpack.c.l.b16 %v1608
        %v1861 = vunpack.c.l.b16 %v1609
        %v1862 = vunpack.c.l.b16 %v1610
        %v1863 = vunpack.c.h.b16 %v1605
        %v1864 = vunpack.c.h.b16 %v1606
        %v1865 = vunpack.c.h.b16 %v1607
        %v1866 = vunpack.c.h.b16 %v1608
        %v1867 = vunpack.c.h.b16 %v1609
        %v1868 = vunpack.c.h.b16 %v1610
        %v1869 = vunpack.c.l.b16 %v1611
        %v1870 = vunpack.c.l.b16 %v1612
        %v1871 = vunpack.c.l.b16 %v1613
        %v1872 = vunpack.c.l.b16 %v1614
        %v1873 = vunpack.c.l.b16 %v1615
        %v1874 = vunpack.c.l.b16 %v1616
        %v1875 = vunpack.c.h.b16 %v1611
        %v1876 = vunpack.c.h.b16 %v1612
        %v1877 = vunpack.c.h.b16 %v1613
        %v1878 = vunpack.c.h.b16 %v1614
        %v1879 = vunpack.c.h.b16 %v1615
        %v1880 = vunpack.c.h.b16 %v1616
        %v1881 = vunpack.c.l.b16 %v1617
        %v1882 = vunpack.c.l.b16 %v1618
        %v1883 = vunpack.c.l.b16 %v1619
        %v1884 = vunpack.c.l.b16 %v1620
        %v1885 = vunpack.c.l.b16 %v1621
        %v1886 = vunpack.c.l.b16 %v1622
        %v1887 = vunpack.c.h.b16 %v1617
        %v1888 = vunpack.c.h.b16 %v1618
        %v1889 = vunpack.c.h.b16 %v1619
        %v1890 = vunpack.c.h.b16 %v1620
        %v1891 = vunpack.c.h.b16 %v1621
        %v1892 = vunpack.c.h.b16 %v1622
        %v1893 = vunpack.c.l.b16 %v1623
        %v1894 = vunpack.c.l.b16 %v1624
        %v1895 = vunpack.c.l.b16 %v1625
        %v1896 = vunpack.c.l.b16 %v1626
        %v1897 = vunpack.c.l.b16 %v1627
        %v1898 = vunpack.c.l.b16 %v1628
        %v1899 = vunpack.c.h.b16 %v1623
        %v1900 = vunpack.c.h.b16 %v1624
        %v1901 = vunpack.c.h.b16 %v1625
        %v1902 = vunpack.c.h.b16 %v1626
        %v1903 = vunpack.c.h.b16 %v1627
        %v1904 = vunpack.c.h.b16 %v1628
        %v1905 = vunpack.c.l.b16 %v1629
        %v1906 = vunpack.c.l.b16 %v1630
        %v1907 = vunpack.c.l.b16 %v1631
        %v1908 = vunpack.c.l.b16 %v1632
        %v1909 = vunpack.c.l.b16 %v1633
        %v1910 = vunpack.c.l.b16 %v1634
        %v1911 = vunpack.c.h.b16 %v1629
        %v1912 = vunpack.c.h.b16 %v1630
        %v1913 = vunpack.c.h.b16 %v1631
        %v1914 = vunpack.c.h.b16 %v1632
        %v1915 = vunpack.c.h.b16 %v1633
        %v1916 = vunpack.c.h.b16 %v1634
        %v1917 = vunpack.c.l.b16 %v1635
        %v1918 = vunpack.c.l.b16 %v1636
        %v1919 = vunpack.c.l.b16 %v1637
        %v1920 = vunpack.c.l.b16 %v1638
        %v1921 = vunpack.c.l.b16 %v1639
        %v1922 = vunpack.c.l.b16 %v1640
        %v1923 = vunpack.c.h.b16 %v1635
        %v1924 = vunpack.c.h.b16 %v1636
        %v1925 = vunpack.c.h.b16 %v1637
        %v1926 = vunpack.c.h.b16 %v1638
        %v1927 = vunpack.c.h.b16 %v1639
        %v1928 = vunpack.c.h.b16 %v1640
        %v1929 = vpack.c.b16 %v1738, %v1737
        %v1930 = vpack.c.b16 %v1740, %v1739
        %v1931 = vpack.c.b16 %v1742, %v1741
        %v1932 = vpack.c.b16 %v1744, %v1743
        %v1933 = vpack.c.b16 %v1746, %v1745
        %v1934 = vpack.c.b16 %v1748, %v1747
        %v1935 = vpack.c.b16 %v1750, %v1749
        %v1936 = vpack.c.b16 %v1752, %v1751
        %v1937 = vpack.c.b16 %v1754, %v1753
        %v1938 = vpack.c.b16 %v1756, %v1755
        %v1939 = vpack.c.b16 %v1758, %v1757
        %v1940 = vpack.c.b16 %v1760, %v1759
        %v1941 = vpack.c.b16 %v1762, %v1761
        %v1942 = vpack.c.b16 %v1764, %v1763
        %v1943 = vpack.c.b16 %v1766, %v1765
        %v1944 = vpack.c.b16 %v1768, %v1767
        %v1945 = vpack.c.b16 %v1770, %v1769
        %v1946 = vpack.c.b16 %v1772, %v1771
        %v1947 = vpack.c.b16 %v1774, %v1773
        %v1948 = vpack.c.b16 %v1776, %v1775
        %v1949 = vpack.c.b16 %v1778, %v1777
        %v1950 = vpack.c.b16 %v1780, %v1779
        %v1951 = vpack.c.b16 %v1782, %v1781
        %v1952 = vpack.c.b16 %v1784, %v1783
        %v1953 = vpack.c.b16 %v1786, %v1785
        %v1954 = vpack.c.b16 %v1788, %v1787
        %v1955 = vpack.c.b16 %v1790, %v1789
        %v1956 = vpack.c.b16 %v1792, %v1791
        %v1957 = vpack.c.b16 %v1794, %v1793
        %v1958 = vpack.c.b16 %v1796, %v1795
        %v1959 = vpack.c.b16 %v1798, %v1797
        %v1960 = vpack.c.b16 %v1800, %v1799
        %v1961 = vpack.c.b16 %v1802, %v1801
        %v1962 = vpack.c.b16 %v1804, %v1803
        %v1963 = vpack.c.b16 %v1806, %v1805
        %v1964 = vpack.c.b16 %v1808, %v1807
        %v1965 = vpack.c.b16 %v1810, %v1809
        %v1966 = vpack.c.b16 %v1812, %v1811
        %v1967 = vpack.c.b16 %v1814, %v1813
        %v1968 = vpack.c.b16 %v1816, %v1815
        %v1969 = vpack.c.b16 %v1818, %v1817
        %v1970 = vpack.c.b16 %v1820, %v1819
        %v1971 = vpack.c.b16 %v1822, %v1821
        %v1972 = vpack.c.b16 %v1824, %v1823
        %v1973 = vpack.c.b16 %v1826, %v1825
        %v1974 = vpack.c.b16 %v1828, %v1827
        %v1975 = vpack.c.b16 %v1830, %v1829
        %v1976 = vpack.c.b16 %v1832, %v1831
        %v1977 = vpack.c.b16 %v1834, %v1833
        %v1978 = vpack.c.b16 %v1836, %v1835
        %v1979 = vpack.c.b16 %v1838, %v1837
        %v1980 = vpack.c.b16 %v1840, %v1839
        %v1981 = vpack.c.b16 %v1842, %v1841
        %v1982 = vpack.c.b16 %v1844, %v1843
        %v1983 = vpack.c.b16 %v1846, %v1845
        %v1984 = vpack.c.b16 %v1848, %v1847
        %v1985 = vpack.c.b16 %v1850, %v1849
        %v1986 = vpack.c.b16 %v1852, %v1851
        %v1987 = vpack.c.b16 %v1854, %v1853
        %v1988 = vpack.c.b16 %v1856, %v1855
        %v1989 = vpack.c.b16 %v1858, %v1857
        %v1990 = vpack.c.b16 %v1860, %v1859
        %v1991 = vpack.c.b16 %v1862, %v1861
        %v1992 = vpack.c.b16 %v1864, %v1863
        %v1993 = vpack.c.b16 %v1866, %v1865
        %v1994 = vpack.c.b16 %v1868, %v1867
        %v1995 = vpack.c.b16 %v1870, %v1869
        %v1996 = vpack.c.b16 %v1872, %v1871
        %v1997 = vpack.c.b16 %v1874, %v1873
        %v1998 = vpack.c.b16 %v1876, %v1875
        %v1999 = vpack.c.b16 %v1878, %v1877
        %v2000 = vpack.c.b16 %v1880, %v1879
        %v2001 = vpack.c.b16 %v1882, %v1881
        %v2002 = vpack.c.b16 %v1884, %v1883
        %v2003 = vpack.c.b16 %v1886, %v1885
        %v2004 = vpack.c.b16 %v1888, %v1887
        %v2005 = vpack.c.b16 %v1890, %v1889
        %v2006 = vpack.c.b16 %v1892, %v1891
        %v2007 = vpack.c.b16 %v1894, %v1893
        %v2008 = vpack.c.b16 %v1896, %v1895
        %v2009 = vpack.c.b16 %v1898, %v1897
        %v2010 = vpack.c.b16 %v1900, %v1899
        %v2011 = vpack.c.b16 %v1902, %v1901
        %v2012 = vpack.c.b16 %v1904, %v1903
        %v2013 = vpack.c.b16 %v1906, %v1905
        %v2014 = vpack.c.b16 %v1908, %v1907
        %v2015 = vpack.c.b16 %v1910, %v1909
        %v2016 = vpack.c.b16 %v1912, %v1911
        %v2017 = vpack.c.b16 %v1914, %v1913
        %v2018 = vpack.c.b16 %v1916, %v1915
        %v2019 = vpack.c.b16 %v1918, %v1917
        %v2020 = vpack.c.b16 %v1920, %v1919
        %v2021 = vpack.c.b16 %v1922, %v1921
        %v2022 = vpack.c.b16 %v1924, %v1923
        %v2023 = vpack.c.b16 %v1926, %v1925
        %v2024 = vpack.c.b16 %v1928, %v1927
        %2121 = vst [vmem:[%s195] sm:$0xff] %v1929
        %2122 = vst [vmem:[%s195 + $0x8] sm:$0xff] %v1930
        %2123 = vst [vmem:[%s195 + $0x10] sm:$0xff] %v1931
        %2124 = vst [vmem:[%s195 + $0x18] sm:$0xff] %v1932
        %2125 = vst [vmem:[%s195 + $0x20] sm:$0xff] %v1933
        %2126 = vst [vmem:[%s195 + $0x28] sm:$0xff] %v1934
        %2127 = vst [vmem:[%s195 + $0x30] sm:$0xff] %v1935
        %2128 = vst [vmem:[%s195 + $0x38] sm:$0xff] %v1936
        %2129 = vst [vmem:[%s195 + $0x40] sm:$0xff] %v1937
        %2130 = vst [vmem:[%s195 + $0x48] sm:$0xff] %v1938
        %2131 = vst [vmem:[%s195 + $0x50] sm:$0xff] %v1939
        %2132 = vst [vmem:[%s195 + $0x58] sm:$0xff] %v1940
        %2133 = vst [vmem:[%s195 + $0x60] sm:$0xff] %v1941
        %2134 = vst [vmem:[%s195 + $0x68] sm:$0xff] %v1942
        %2135 = vst [vmem:[%s195 + $0x70] sm:$0xff] %v1943
        %2136 = vst [vmem:[%s195 + $0x78] sm:$0xff] %v1944
        %2137 = vst [vmem:[%s195 + $0x80] sm:$0xff] %v1945
        %2138 = vst [vmem:[%s195 + $0x88] sm:$0xff] %v1946
        %2139 = vst [vmem:[%s195 + $0x90] sm:$0xff] %v1947
        %2140 = vst [vmem:[%s195 + $0x98] sm:$0xff] %v1948
        %2141 = vst [vmem:[%s195 + $0xa0] sm:$0xff] %v1949
        %2142 = vst [vmem:[%s195 + $0xa8] sm:$0xff] %v1950
        %2143 = vst [vmem:[%s195 + $0xb0] sm:$0xff] %v1951
        %2144 = vst [vmem:[%s195 + $0xb8] sm:$0xff] %v1952
        %2145 = vst [vmem:[%s195 + $0xc0] sm:$0xff] %v1953
        %2146 = vst [vmem:[%s195 + $0xc8] sm:$0xff] %v1954
        %2147 = vst [vmem:[%s195 + $0xd0] sm:$0xff] %v1955
        %2148 = vst [vmem:[%s195 + $0xd8] sm:$0xff] %v1956
        %2149 = vst [vmem:[%s195 + $0xe0] sm:$0xff] %v1957
        %2150 = vst [vmem:[%s195 + $0xe8] sm:$0xff] %v1958
        %2151 = vst [vmem:[%s195 + $0xf0] sm:$0xff] %v1959
        %2152 = vst [vmem:[%s195 + $0xf8] sm:$0xff] %v1960
        %2153 = vst [vmem:[%s195 + $0x100] sm:$0xff] %v1961
        %2154 = vst [vmem:[%s195 + $0x108] sm:$0xff] %v1962
        %2155 = vst [vmem:[%s195 + $0x110] sm:$0xff] %v1963
        %2156 = vst [vmem:[%s195 + $0x118] sm:$0xff] %v1964
        %2157 = vst [vmem:[%s195 + $0x120] sm:$0xff] %v1965
        %2158 = vst [vmem:[%s195 + $0x128] sm:$0xff] %v1966
        %2159 = vst [vmem:[%s195 + $0x130] sm:$0xff] %v1967
        %2160 = vst [vmem:[%s195 + $0x138] sm:$0xff] %v1968
        %2161 = vst [vmem:[%s195 + $0x140] sm:$0xff] %v1969
        %2162 = vst [vmem:[%s195 + $0x148] sm:$0xff] %v1970
        %2163 = vst [vmem:[%s195 + $0x150] sm:$0xff] %v1971
        %2164 = vst [vmem:[%s195 + $0x158] sm:$0xff] %v1972
        %2165 = vst [vmem:[%s195 + $0x160] sm:$0xff] %v1973
        %2166 = vst [vmem:[%s195 + $0x168] sm:$0xff] %v1974
        %2167 = vst [vmem:[%s195 + $0x170] sm:$0xff] %v1975
        %2168 = vst [vmem:[%s195 + $0x178] sm:$0xff] %v1976
        %2169 = vst [vmem:[%s195 + $0x180] sm:$0xff] %v1977
        %2170 = vst [vmem:[%s195 + $0x188] sm:$0xff] %v1978
        %2171 = vst [vmem:[%s195 + $0x190] sm:$0xff] %v1979
        %2172 = vst [vmem:[%s195 + $0x198] sm:$0xff] %v1980
        %2173 = vst [vmem:[%s195 + $0x1a0] sm:$0xff] %v1981
        %2174 = vst [vmem:[%s195 + $0x1a8] sm:$0xff] %v1982
        %2175 = vst [vmem:[%s195 + $0x1b0] sm:$0xff] %v1983
        %2176 = vst [vmem:[%s195 + $0x1b8] sm:$0xff] %v1984
        %2177 = vst [vmem:[%s195 + $0x1c0] sm:$0xff] %v1985
        %2178 = vst [vmem:[%s195 + $0x1c8] sm:$0xff] %v1986
        %2179 = vst [vmem:[%s195 + $0x1d0] sm:$0xff] %v1987
        %2180 = vst [vmem:[%s195 + $0x1d8] sm:$0xff] %v1988
        %2181 = vst [vmem:[%s195 + $0x1e0] sm:$0xff] %v1989
        %2182 = vst [vmem:[%s195 + $0x1e8] sm:$0xff] %v1990
        %2183 = vst [vmem:[%s195 + $0x1f0] sm:$0xff] %v1991
        %2184 = vst [vmem:[%s195 + $0x1f8] sm:$0xff] %v1992
        %2185 = vst [vmem:[%s195 + $0x200] sm:$0xff] %v1993
        %2186 = vst [vmem:[%s195 + $0x208] sm:$0xff] %v1994
        %2187 = vst [vmem:[%s195 + $0x210] sm:$0xff] %v1995
        %2188 = vst [vmem:[%s195 + $0x218] sm:$0xff] %v1996
        %2189 = vst [vmem:[%s195 + $0x220] sm:$0xff] %v1997
        %2190 = vst [vmem:[%s195 + $0x228] sm:$0xff] %v1998
        %2191 = vst [vmem:[%s195 + $0x230] sm:$0xff] %v1999
        %2192 = vst [vmem:[%s195 + $0x238] sm:$0xff] %v2000
        %2193 = vst [vmem:[%s195 + $0x240] sm:$0xff] %v2001
        %2194 = vst [vmem:[%s195 + $0x248] sm:$0xff] %v2002
        %2195 = vst [vmem:[%s195 + $0x250] sm:$0xff] %v2003
        %2196 = vst [vmem:[%s195 + $0x258] sm:$0xff] %v2004
        %2197 = vst [vmem:[%s195 + $0x260] sm:$0xff] %v2005
        %2198 = vst [vmem:[%s195 + $0x268] sm:$0xff] %v2006
        %2199 = vst [vmem:[%s195 + $0x270] sm:$0xff] %v2007
        %2200 = vst [vmem:[%s195 + $0x278] sm:$0xff] %v2008
        %2201 = vst [vmem:[%s195 + $0x280] sm:$0xff] %v2009
        %2202 = vst [vmem:[%s195 + $0x288] sm:$0xff] %v2010
        %2203 = vst [vmem:[%s195 + $0x290] sm:$0xff] %v2011
        %2204 = vst [vmem:[%s195 + $0x298] sm:$0xff] %v2012
        %2205 = vst [vmem:[%s195 + $0x2a0] sm:$0xff] %v2013
        %2206 = vst [vmem:[%s195 + $0x2a8] sm:$0xff] %v2014
        %2207 = vst [vmem:[%s195 + $0x2b0] sm:$0xff] %v2015
        %2208 = vst [vmem:[%s195 + $0x2b8] sm:$0xff] %v2016
        %2209 = vst [vmem:[%s195 + $0x2c0] sm:$0xff] %v2017
        %2210 = vst [vmem:[%s195 + $0x2c8] sm:$0xff] %v2018
        %2211 = vst [vmem:[%s195 + $0x2d0] sm:$0xff] %v2019
        %2212 = vst [vmem:[%s195 + $0x2d8] sm:$0xff] %v2020
        %2213 = vst [vmem:[%s195 + $0x2e0] sm:$0xff] %v2021
        %2214 = vst [vmem:[%s195 + $0x2e8] sm:$0xff] %v2022
        %2215 = vst [vmem:[%s195 + $0x2f0] sm:$0xff] %v2023
        %2216 = vst [vmem:[%s195 + $0x2f8] sm:$0xff] %v2024
        %s2217 = sand.u32 %s91, 1
        %s2218 = scalar_lea.sflag [#allocation4], %s2217
        %s2219 = sand.u32 %s91, 1
        %s2220 = smul.addr %s2219, 768
        %s2221 = scalar_lea.vmem [#allocation7], %s2220
        // Predicated region
        $region37: #{tpu_custom_call.1} parent=27 // pred_check
          %p2222 = pneg %p101
        $region38: #{tpu_custom_call.1} parent=27 // pred_check_branch
          %2224 = sbr.rel (%p2222) target = $region40
        $region39: #{tpu_custom_call.1} parent=27 // pred_region
          %s2225 = smul.u32 32, %s25
          %s2227 = ssub.s32 12288, 12288
          %2228 = vsyncadd %s2218, %s2227
          %s2229 = smul.addr %s2225, 6
          %s2230 = smul.addr %s24, 192
          %s2231 = sadd.s32 %s2229, %s2230
          %s2232 = smul.addr %s2231, 64
          %s2233 = scalar_lea.hbm %s2, %s2232
          %s2234 = sshll.u32 %s2221, 4
          %s2235 = int_to_ptr.vmem [resolvable:$true] %s2234
          %2240 = dma.vmem_to_hbm [thread:$0]  %s2235, 12288, %s2233, %s2218, 384, 384, 24
        $region40: #{tpu_custom_call.1} parent=27 // pred_fallthru
          _
      $region28: #{tpu_custom_call.1} parent=5 // pred_fallthru
        _
      %p2241 = scmp.le.s32.totalorder 2, %s15
      // Predicated region
      $region41: #{tpu_custom_call.1} parent=5 // pred_check
        %p2242 = pneg %p2241
      $region42: #{tpu_custom_call.1} parent=5 // pred_check_branch
        %2244 = sbr.rel (%p2242) target = $region44
      $region43: #{tpu_custom_call.1} parent=5 // pred_region
        %s2245 = ssub.s32 %s15, 2
        // Predicated region
        $region45: #{tpu_custom_call.1} parent=43 // pred_check
          %p2246 = pneg %p107
        $region46: #{tpu_custom_call.1} parent=43 // pred_check_branch
          %2248 = sbr.rel (%p2246) target = $region48
        $region47: #{tpu_custom_call.1} parent=43 // pred_region
          %s2249 = sand.u32 %s92, 1
          %s2250 = scalar_lea.sflag [#allocation4], %s2249
          %s2251 = sand.u32 %s92, 1
          %s2252 = smul.addr %s2251, 768
          %s2253 = scalar_lea.vmem [#allocation7], %s2252
          %2254 = dma.done %s2250, 12288
        $region48: #{tpu_custom_call.1} parent=43 // pred_fallthru
          _
      $region44: #{tpu_custom_call.1} parent=5 // pred_fallthru
        _
    $region6: #{tpu_custom_call.1} parent=1 // loop_footer
      %s19 = sadd.s32 1, %s15
    $region7: #{tpu_custom_call.1} parent=1 // loop_footer_branch
      %14 = sbr.rel target = $region3
    $region8: #{tpu_custom_call.1} parent=1 // loop_exit
      _
    %2255 = vsyncpa [#allocation3], 1
    %s2256 = scalar_lea.sflag [#allocation3], 1
    %2257 = vsyncpa %s2256, 1
    %2258 = vsyncpa [#allocation6], 1
    %2259 = vsyncpa [#allocation4], 1
    %s2260 = scalar_lea.sflag [#allocation4], 1
    %2261 = vsyncpa %s2260, 1

</llo_original>
